<compile_context>
chip_gen: v5e
topology: v5e:2x2
jax: 0.10.0
libtpu: 0.0.40
codegen_flags: <defaults>
</compile_context>

<pallas_src>
import functools

import jax
import jax.numpy as jnp
from jax.experimental import pallas as pl
from jax.experimental.pallas import tpu as pltpu


# ---------------------------------------------------------------------------
# Pallas kernel: fused conv1 (1x1x1) -> convT (k=2,s=2) -> [+skip] -> conv3 (1x1x1)
# ---------------------------------------------------------------------------
def _ccup_kernel(*refs, has_skip):
    if has_skip:
        x_ref, f_ref, w1_ref, w23_ref, c_ref, w3s_ref, o_ref = refs
    else:
        x_ref, w1_ref, w23_ref, c_ref, o_ref = refs
        f_ref = w3s_ref = None

    cout = o_ref.shape[2]

    # conv1 (1x1x1 pointwise conv == channel matmul).  b1 is folded into c_ref.
    z = jnp.dot(w1_ref[...], x_ref[0],
                preferred_element_type=jnp.float32)            # (Cout, Pt)

    # conv2 (ConvTranspose3d k=2,s=2) and conv3's "up" half, pre-composed on the
    # host into one stacked weight: all 8 taps in a single M=8*Cout MXU matmul.
    y = jnp.dot(w23_ref[...], z,
                preferred_element_type=jnp.float32) + c_ref[...]  # (8*Cout, Pt)

    if has_skip:
        w3s = w3s_ref[...]                                     # (Cout, Cs)
        for k in range(8):
            yk = y[k * cout:(k + 1) * cout, :]                 # static sublane slice
            yk = yk + jnp.dot(w3s, f_ref[0, k],
                              preferred_element_type=jnp.float32)
            o_ref[0, k] = yk.astype(o_ref.dtype)               # (Cout, Pt)
    else:
        o_ref[0] = y.reshape(o_ref.shape[1:]).astype(o_ref.dtype)


# ---------------------------------------------------------------------------
# Wrapper
# ---------------------------------------------------------------------------
def _choose_p_tile(P, N):
    # largest lane-aligned tile that divides P; prefer >=4 total grid steps so
    # pipelining / both v7x TensorCores get work.
    for t in (1024, 512, 256, 128):
        if P % t == 0 and N * (P // t) >= 4:
            return t
    for t in (1024, 512, 256, 128):
        if P % t == 0:
            return t
    return P  # fallback: full spatial extent as a single (full-dim) block


def consecutive_conv_up(x, feat, params, *, p_tile=None):
    """x: (N, Cin, D, H, W); feat: (N, Cs, 2D, 2H, 2W) or None (only if Cs==0)."""
    w1, b1 = params["w1"], params["b1"]
    w2, b2 = params["w2"], params["b2"]
    w3, b3 = params["w3"], params["b3"]

    N, Cin, D, H, W = x.shape
    Cout = w1.shape[0]
    C3in = w3.shape[1]
    Cs = C3in - Cout
    has_skip = feat is not None
    if not has_skip:
        assert Cs == 0, "feat=None only valid when skip_channels == 0"

    P = D * H * W
    Pt = p_tile if p_tile is not None else _choose_p_tile(P, N)

    hp = jax.lax.Precision.HIGHEST

    # ---- constant-fold the weight chain (exact linear algebra, tiny arrays) --
    w1m = w1.reshape(Cout, Cin)
    b1v = b1.reshape(Cout)
    # ConvTranspose3d weight (in=Cout, out=Cout, 2,2,2) -> (tap, out, in)
    w2t = jnp.transpose(w2, (2, 3, 4, 1, 0)).reshape(8, Cout, Cout)
    w3m = w3.reshape(Cout, C3in)
    w3u = w3m[:, :Cout]
    w3s = w3m[:, Cout:]
    w23 = jnp.einsum("oc,kci->koi", w3u, w2t, precision=hp)      # (8,Cout,Cout)
    c = (jnp.einsum("koi,i->ko", w23, b1v, precision=hp)
         + (jnp.einsum("oc,c->o", w3u, b2, precision=hp) + b3)[None, :])
    w23m = w23.reshape(8 * Cout, Cout)
    cm = c.reshape(8 * Cout, 1)

    # ---- layout plumbing (cheap XLA reshapes / transposes) ----
    x2 = x.reshape(N, Cin, P)                                    # lanes = P

    inputs = [x2]
    in_specs = [pl.BlockSpec((1, Cin, Pt), lambda n, p: (n, 0, p))]
    if has_skip:
        # feat (N,Cs,2D,2H,2W) -> tap-major (N, 8, Cs, P), aligned with the
        # transposed-conv scatter pattern so the concat is never materialized.
        fr = feat.reshape(N, Cs, D, 2, H, 2, W, 2)
        fr = jnp.transpose(fr, (0, 3, 5, 7, 1, 2, 4, 6)).reshape(N, 8, Cs, P)
        inputs.append(fr)
        in_specs.append(pl.BlockSpec((1, 8, Cs, Pt), lambda n, p: (n, 0, 0, p)))

    inputs += [w1m, w23m, cm]
    in_specs += [
        pl.BlockSpec((Cout, Cin), lambda n, p: (0, 0)),
        pl.BlockSpec((8 * Cout, Cout), lambda n, p: (0, 0)),
        pl.BlockSpec((8 * Cout, 1), lambda n, p: (0, 0)),
    ]
    if has_skip:
        inputs.append(w3s)
        in_specs.append(pl.BlockSpec((Cout, Cs), lambda n, p: (0, 0)))

    grid = (N, P // Pt)
    kern = functools.partial(_ccup_kernel, has_skip=has_skip)
    out = pl.pallas_call(
        kern,
        out_shape=jax.ShapeDtypeStruct((N, 8, Cout, P), x.dtype),
        grid_spec=pltpu.PrefetchScalarGridSpec(
            num_scalar_prefetch=0,
            grid=grid,
            in_specs=in_specs,
            out_specs=pl.BlockSpec((1, 8, Cout, Pt), lambda n, p: (n, 0, 0, p)),
        ),
        compiler_params=pltpu.CompilerParams(
            dimension_semantics=("parallel", "parallel")),
    )(*inputs)

    # (N, kd, kh, kw, Cout, D, H, W) -> (N, Cout, 2D, 2H, 2W)
    out = out.reshape(N, 2, 2, 2, Cout, D, H, W)
    out = jnp.transpose(out, (0, 4, 5, 1, 6, 2, 7, 3))
    out = out.reshape(N, Cout, 2 * D, 2 * H, 2 * W)
    return out


# ---------------------------------------------------------------------------
# Parameters (PyTorch-style uniform init) and a pure-JAX reference
# ---------------------------------------------------------------------------
def init_consecutive_conv_up(key, in_channels, out_channels, skip_channels):
    ks = jax.random.split(key, 6)

    def u(k, shape, fan_in):
        bound = 1.0 / (fan_in ** 0.5)
        return jax.random.uniform(k, shape, jnp.float32, -bound, bound)

    return {
        "w1": u(ks[0], (out_channels, in_channels, 1, 1, 1), in_channels),
        "b1": u(ks[1], (out_channels,), in_channels),
        # ConvTranspose3d weight layout: (in_ch, out_ch, kD, kH, kW)
        "w2": u(ks[2], (out_channels, out_channels, 2, 2, 2), out_channels * 8),
        "b2": u(ks[3], (out_channels,), out_channels * 8),
        "w3": u(ks[4], (out_channels, out_channels + skip_channels, 1, 1, 1),
                out_channels + skip_channels),
        "b3": u(ks[5], (out_channels,), out_channels + skip_channels),
    }


def consecutive_conv_up_ref(x, feat, params):
    hp = jax.lax.Precision.HIGHEST
    w1 = params["w1"][:, :, 0, 0, 0]
    w2 = params["w2"]
    w3 = params["w3"][:, :, 0, 0, 0]
    b1, b2, b3 = params["b1"], params["b2"], params["b3"]

    z = jnp.einsum("oi,nidhw->nodhw", w1, x, precision=hp)
    z = z + b1[None, :, None, None, None]
    N, Co, D, H, W = z.shape
    up = jnp.zeros((N, Co, 2 * D, 2 * H, 2 * W), z.dtype)
    for kd in range(2):
        for kh in range(2):
            for kw in range(2):
                tap = jnp.einsum("io,nidhw->nodhw", w2[:, :, kd, kh, kw], z,
                                 precision=hp)
                up = up.at[:, :, kd::2, kh::2, kw::2].set(tap)
    up = up + b2[None, :, None, None, None]
    cat = up if feat is None else jnp.concatenate([up, feat], axis=1)
    y = jnp.einsum("oi,nidhw->nodhw", w3, cat, precision=hp)
    return y + b3[None, :, None, None, None]


# ---------------------------------------------------------------------------
if __name__ == "__main__":
    in_channels, out_channels, skip_channels = 32, 16, 16
    N, D, H, W = 2, 8, 8, 8

    key = jax.random.PRNGKey(0)
    kx, kf, kp = jax.random.split(key, 3)
    x = jax.random.normal(kx, (N, in_channels, D, H, W), jnp.float32)
    feat = jax.random.normal(kf, (N, skip_channels, 2 * D, 2 * H, 2 * W),
                             jnp.float32)
    params = init_consecutive_conv_up(kp, in_channels, out_channels,
                                      skip_channels)

    fwd = jax.jit(consecutive_conv_up)
    out = jax.block_until_ready(fwd(x, feat, params))
    assert out.shape == (N, out_channels, 2 * D, 2 * H, 2 * W), out.shape

    ref = jax.block_until_ready(consecutive_conv_up_ref(x, feat, params))
    err = float(jnp.max(jnp.abs(out - ref)))
    assert err < 5e-2, f"max abs err vs reference: {err}"

    print("KERNEL_OK")
</pallas_src>

<mosaic_0001>
module attributes {stable_mosaic.version = 11 : i64} {
  func.func @_ccup_kernel(%arg0: i32, %arg1: i32, %arg2: memref<1x32x256xf32, #tpu.memory_space<vmem>>, %arg3: memref<1x8x16x256xf32, #tpu.memory_space<vmem>>, %arg4: memref<16x32xf32, #tpu.memory_space<vmem>>, %arg5: memref<128x16xf32, #tpu.memory_space<vmem>>, %arg6: memref<128x1xf32, #tpu.memory_space<vmem>>, %arg7: memref<16x16xf32, #tpu.memory_space<vmem>>, %arg8: memref<1x8x16x256xf32, #tpu.memory_space<vmem>>) attributes {dimension_semantics = [#tpu.dimension_semantics<parallel>, #tpu.dimension_semantics<parallel>], iteration_bounds = array<i64: 2, 2>, scalar_prefetch = 0 : i64, scratch_operands = 0 : i64, tpu.core_type = #tpu.core_type<tc>, window_params = [{transform_indices = @transform_0, window_bounds = array<i64: 1, 32, 256>}, {transform_indices = @transform_1, window_bounds = array<i64: 1, 8, 16, 256>}, {pipeline_mode = #tpu.pipeline_mode<synchronous>, transform_indices = @transform_2, window_bounds = array<i64: 16, 32>}, {pipeline_mode = #tpu.pipeline_mode<synchronous>, transform_indices = @transform_3, window_bounds = array<i64: 128, 16>}, {pipeline_mode = #tpu.pipeline_mode<synchronous>, transform_indices = @transform_4, window_bounds = array<i64: 128, 1>}, {pipeline_mode = #tpu.pipeline_mode<synchronous>, transform_indices = @transform_5, window_bounds = array<i64: 16, 16>}, {transform_indices = @transform_6, window_bounds = array<i64: 1, 8, 16, 256>}]} {
    %c0 = arith.constant 0 : index
    %c0_0 = arith.constant 0 : index
    %0 = vector.load %arg4[%c0, %c0_0] : memref<16x32xf32, #tpu.memory_space<vmem>>, vector<16x32xf32>
    %c0_1 = arith.constant 0 : index
    %c0_2 = arith.constant 0 : index
    %c0_3 = arith.constant 0 : index
    %1 = vector.load %arg2[%c0_1, %c0_2, %c0_3] : memref<1x32x256xf32, #tpu.memory_space<vmem>>, vector<1x32x256xf32>
    %2 = vector.shape_cast %1 : vector<1x32x256xf32> to vector<32x256xf32>
    %cst = arith.constant dense<0.000000e+00> : vector<16x256xf32>
    %3 = tpu.matmul %0, %2, %cst {dimension_numbers = #tpu.dot_dimension_numbers<[1], [0], [0], [1], [0, 0, 1, 1], [], []>} : vector<16x32xf32>, vector<32x256xf32>, vector<16x256xf32> -> vector<16x256xf32>
    %c0_4 = arith.constant 0 : index
    %c0_5 = arith.constant 0 : index
    %4 = vector.load %arg5[%c0_4, %c0_5] : memref<128x16xf32, #tpu.memory_space<vmem>>, vector<128x16xf32>
    %cst_6 = arith.constant dense<0.000000e+00> : vector<128x256xf32>
    %5 = tpu.matmul %4, %3, %cst_6 {dimension_numbers = #tpu.dot_dimension_numbers<[1], [0], [0], [1], [0, 0, 1, 1], [], []>} : vector<128x16xf32>, vector<16x256xf32>, vector<128x256xf32> -> vector<128x256xf32>
    %c0_7 = arith.constant 0 : index
    %c0_8 = arith.constant 0 : index
    %6 = vector.load %arg6[%c0_7, %c0_8] : memref<128x1xf32, #tpu.memory_space<vmem>>, vector<128x1xf32>
    %7 = vector.broadcast %6 : vector<128x1xf32> to vector<128x256xf32>
    %8 = arith.addf %5, %7 : vector<128x256xf32>
    %c0_9 = arith.constant 0 : index
    %c0_10 = arith.constant 0 : index
    %9 = vector.load %arg7[%c0_9, %c0_10] : memref<16x16xf32, #tpu.memory_space<vmem>>, vector<16x16xf32>
    %10 = vector.extract_strided_slice %8 {offsets = [0, 0], sizes = [16, 256], strides = [1, 1]} : vector<128x256xf32> to vector<16x256xf32>
    %c0_11 = arith.constant 0 : index
    %c0_12 = arith.constant 0 : index
    %c0_13 = arith.constant 0 : index
    %c0_14 = arith.constant 0 : index
    %11 = vector.load %arg3[%c0_11, %c0_12, %c0_13, %c0_14] : memref<1x8x16x256xf32, #tpu.memory_space<vmem>>, vector<1x1x16x256xf32>
    %12 = vector.shape_cast %11 : vector<1x1x16x256xf32> to vector<16x256xf32>
    %cst_15 = arith.constant dense<0.000000e+00> : vector<16x256xf32>
    %13 = tpu.matmul %9, %12, %cst_15 {dimension_numbers = #tpu.dot_dimension_numbers<[1], [0], [0], [1], [0, 0, 1, 1], [], []>} : vector<16x16xf32>, vector<16x256xf32>, vector<16x256xf32> -> vector<16x256xf32>
    %14 = arith.addf %10, %13 : vector<16x256xf32>
    %c0_16 = arith.constant 0 : index
    %c0_17 = arith.constant 0 : index
    %c0_18 = arith.constant 0 : index
    %c0_19 = arith.constant 0 : index
    %15 = vector.load %arg8[%c0_16, %c0_17, %c0_18, %c0_19] : memref<1x8x16x256xf32, #tpu.memory_space<vmem>>, vector<1x1x16x256xf32>
    %16 = vector.shape_cast %15 : vector<1x1x16x256xf32> to vector<16x256xf32>
    %17 = vector.shape_cast %14 : vector<16x256xf32> to vector<1x1x16x256xf32>
    tpu.vector_store %arg8[%c0_16, %c0_17, %c0_18, %c0_19], %17 {strides = array<i32>} : memref<1x8x16x256xf32, #tpu.memory_space<vmem>>, vector<1x1x16x256xf32>,
    %18 = vector.extract_strided_slice %8 {offsets = [16, 0], sizes = [16, 256], strides = [1, 1]} : vector<128x256xf32> to vector<16x256xf32>
    %c0_20 = arith.constant 0 : index
    %c1 = arith.constant 1 : index
    %c0_21 = arith.constant 0 : index
    %c0_22 = arith.constant 0 : index
    %19 = vector.load %arg3[%c0_20, %c1, %c0_21, %c0_22] : memref<1x8x16x256xf32, #tpu.memory_space<vmem>>, vector<1x1x16x256xf32>
    %20 = vector.shape_cast %19 : vector<1x1x16x256xf32> to vector<16x256xf32>
    %cst_23 = arith.constant dense<0.000000e+00> : vector<16x256xf32>
    %21 = tpu.matmul %9, %20, %cst_23 {dimension_numbers = #tpu.dot_dimension_numbers<[1], [0], [0], [1], [0, 0, 1, 1], [], []>} : vector<16x16xf32>, vector<16x256xf32>, vector<16x256xf32> -> vector<16x256xf32>
    %22 = arith.addf %18, %21 : vector<16x256xf32>
    %c0_24 = arith.constant 0 : index
    %c1_25 = arith.constant 1 : index
    %c0_26 = arith.constant 0 : index
    %c0_27 = arith.constant 0 : index
    %23 = vector.load %arg8[%c0_24, %c1_25, %c0_26, %c0_27] : memref<1x8x16x256xf32, #tpu.memory_space<vmem>>, vector<1x1x16x256xf32>
    %24 = vector.shape_cast %23 : vector<1x1x16x256xf32> to vector<16x256xf32>
    %25 = vector.shape_cast %22 : vector<16x256xf32> to vector<1x1x16x256xf32>
    tpu.vector_store %arg8[%c0_24, %c1_25, %c0_26, %c0_27], %25 {strides = array<i32>} : memref<1x8x16x256xf32, #tpu.memory_space<vmem>>, vector<1x1x16x256xf32>,
    %26 = vector.extract_strided_slice %8 {offsets = [32, 0], sizes = [16, 256], strides = [1, 1]} : vector<128x256xf32> to vector<16x256xf32>
    %c0_28 = arith.constant 0 : index
    %c2 = arith.constant 2 : index
    %c0_29 = arith.constant 0 : index
    %c0_30 = arith.constant 0 : index
    %27 = vector.load %arg3[%c0_28, %c2, %c0_29, %c0_30] : memref<1x8x16x256xf32, #tpu.memory_space<vmem>>, vector<1x1x16x256xf32>
    %28 = vector.shape_cast %27 : vector<1x1x16x256xf32> to vector<16x256xf32>
    %cst_31 = arith.constant dense<0.000000e+00> : vector<16x256xf32>
    %29 = tpu.matmul %9, %28, %cst_31 {dimension_numbers = #tpu.dot_dimension_numbers<[1], [0], [0], [1], [0, 0, 1, 1], [], []>} : vector<16x16xf32>, vector<16x256xf32>, vector<16x256xf32> -> vector<16x256xf32>
    %30 = arith.addf %26, %29 : vector<16x256xf32>
    %c0_32 = arith.constant 0 : index
    %c2_33 = arith.constant 2 : index
    %c0_34 = arith.constant 0 : index
    %c0_35 = arith.constant 0 : index
    %31 = vector.load %arg8[%c0_32, %c2_33, %c0_34, %c0_35] : memref<1x8x16x256xf32, #tpu.memory_space<vmem>>, vector<1x1x16x256xf32>
    %32 = vector.shape_cast %31 : vector<1x1x16x256xf32> to vector<16x256xf32>
    %33 = vector.shape_cast %30 : vector<16x256xf32> to vector<1x1x16x256xf32>
    tpu.vector_store %arg8[%c0_32, %c2_33, %c0_34, %c0_35], %33 {strides = array<i32>} : memref<1x8x16x256xf32, #tpu.memory_space<vmem>>, vector<1x1x16x256xf32>,
    %34 = vector.extract_strided_slice %8 {offsets = [48, 0], sizes = [16, 256], strides = [1, 1]} : vector<128x256xf32> to vector<16x256xf32>
    %c0_36 = arith.constant 0 : index
    %c3 = arith.constant 3 : index
    %c0_37 = arith.constant 0 : index
    %c0_38 = arith.constant 0 : index
    %35 = vector.load %arg3[%c0_36, %c3, %c0_37, %c0_38] : memref<1x8x16x256xf32, #tpu.memory_space<vmem>>, vector<1x1x16x256xf32>
    %36 = vector.shape_cast %35 : vector<1x1x16x256xf32> to vector<16x256xf32>
    %cst_39 = arith.constant dense<0.000000e+00> : vector<16x256xf32>
    %37 = tpu.matmul %9, %36, %cst_39 {dimension_numbers = #tpu.dot_dimension_numbers<[1], [0], [0], [1], [0, 0, 1, 1], [], []>} : vector<16x16xf32>, vector<16x256xf32>, vector<16x256xf32> -> vector<16x256xf32>
    %38 = arith.addf %34, %37 : vector<16x256xf32>
    %c0_40 = arith.constant 0 : index
    %c3_41 = arith.constant 3 : index
    %c0_42 = arith.constant 0 : index
    %c0_43 = arith.constant 0 : index
    %39 = vector.load %arg8[%c0_40, %c3_41, %c0_42, %c0_43] : memref<1x8x16x256xf32, #tpu.memory_space<vmem>>, vector<1x1x16x256xf32>
    %40 = vector.shape_cast %39 : vector<1x1x16x256xf32> to vector<16x256xf32>
    %41 = vector.shape_cast %38 : vector<16x256xf32> to vector<1x1x16x256xf32>
    tpu.vector_store %arg8[%c0_40, %c3_41, %c0_42, %c0_43], %41 {strides = array<i32>} : memref<1x8x16x256xf32, #tpu.memory_space<vmem>>, vector<1x1x16x256xf32>,
    %42 = vector.extract_strided_slice %8 {offsets = [64, 0], sizes = [16, 256], strides = [1, 1]} : vector<128x256xf32> to vector<16x256xf32>
    %c0_44 = arith.constant 0 : index
    %c4 = arith.constant 4 : index
    %c0_45 = arith.constant 0 : index
    %c0_46 = arith.constant 0 : index
    %43 = vector.load %arg3[%c0_44, %c4, %c0_45, %c0_46] : memref<1x8x16x256xf32, #tpu.memory_space<vmem>>, vector<1x1x16x256xf32>
    %44 = vector.shape_cast %43 : vector<1x1x16x256xf32> to vector<16x256xf32>
    %cst_47 = arith.constant dense<0.000000e+00> : vector<16x256xf32>
    %45 = tpu.matmul %9, %44, %cst_47 {dimension_numbers = #tpu.dot_dimension_numbers<[1], [0], [0], [1], [0, 0, 1, 1], [], []>} : vector<16x16xf32>, vector<16x256xf32>, vector<16x256xf32> -> vector<16x256xf32>
    %46 = arith.addf %42, %45 : vector<16x256xf32>
    %c0_48 = arith.constant 0 : index
    %c4_49 = arith.constant 4 : index
    %c0_50 = arith.constant 0 : index
    %c0_51 = arith.constant 0 : index
    %47 = vector.load %arg8[%c0_48, %c4_49, %c0_50, %c0_51] : memref<1x8x16x256xf32, #tpu.memory_space<vmem>>, vector<1x1x16x256xf32>
    %48 = vector.shape_cast %47 : vector<1x1x16x256xf32> to vector<16x256xf32>
    %49 = vector.shape_cast %46 : vector<16x256xf32> to vector<1x1x16x256xf32>
    tpu.vector_store %arg8[%c0_48, %c4_49, %c0_50, %c0_51], %49 {strides = array<i32>} : memref<1x8x16x256xf32, #tpu.memory_space<vmem>>, vector<1x1x16x256xf32>,
    %50 = vector.extract_strided_slice %8 {offsets = [80, 0], sizes = [16, 256], strides = [1, 1]} : vector<128x256xf32> to vector<16x256xf32>
    %c0_52 = arith.constant 0 : index
    %c5 = arith.constant 5 : index
    %c0_53 = arith.constant 0 : index
    %c0_54 = arith.constant 0 : index
    %51 = vector.load %arg3[%c0_52, %c5, %c0_53, %c0_54] : memref<1x8x16x256xf32, #tpu.memory_space<vmem>>, vector<1x1x16x256xf32>
    %52 = vector.shape_cast %51 : vector<1x1x16x256xf32> to vector<16x256xf32>
    %cst_55 = arith.constant dense<0.000000e+00> : vector<16x256xf32>
    %53 = tpu.matmul %9, %52, %cst_55 {dimension_numbers = #tpu.dot_dimension_numbers<[1], [0], [0], [1], [0, 0, 1, 1], [], []>} : vector<16x16xf32>, vector<16x256xf32>, vector<16x256xf32> -> vector<16x256xf32>
    %54 = arith.addf %50, %53 : vector<16x256xf32>
    %c0_56 = arith.constant 0 : index
    %c5_57 = arith.constant 5 : index
    %c0_58 = arith.constant 0 : index
    %c0_59 = arith.constant 0 : index
    %55 = vector.load %arg8[%c0_56, %c5_57, %c0_58, %c0_59] : memref<1x8x16x256xf32, #tpu.memory_space<vmem>>, vector<1x1x16x256xf32>
    %56 = vector.shape_cast %55 : vector<1x1x16x256xf32> to vector<16x256xf32>
    %57 = vector.shape_cast %54 : vector<16x256xf32> to vector<1x1x16x256xf32>
    tpu.vector_store %arg8[%c0_56, %c5_57, %c0_58, %c0_59], %57 {strides = array<i32>} : memref<1x8x16x256xf32, #tpu.memory_space<vmem>>, vector<1x1x16x256xf32>,
    %58 = vector.extract_strided_slice %8 {offsets = [96, 0], sizes = [16, 256], strides = [1, 1]} : vector<128x256xf32> to vector<16x256xf32>
    %c0_60 = arith.constant 0 : index
    %c6 = arith.constant 6 : index
    %c0_61 = arith.constant 0 : index
    %c0_62 = arith.constant 0 : index
    %59 = vector.load %arg3[%c0_60, %c6, %c0_61, %c0_62] : memref<1x8x16x256xf32, #tpu.memory_space<vmem>>, vector<1x1x16x256xf32>
    %60 = vector.shape_cast %59 : vector<1x1x16x256xf32> to vector<16x256xf32>
    %cst_63 = arith.constant dense<0.000000e+00> : vector<16x256xf32>
    %61 = tpu.matmul %9, %60, %cst_63 {dimension_numbers = #tpu.dot_dimension_numbers<[1], [0], [0], [1], [0, 0, 1, 1], [], []>} : vector<16x16xf32>, vector<16x256xf32>, vector<16x256xf32> -> vector<16x256xf32>
    %62 = arith.addf %58, %61 : vector<16x256xf32>
    %c0_64 = arith.constant 0 : index
    %c6_65 = arith.constant 6 : index
    %c0_66 = arith.constant 0 : index
    %c0_67 = arith.constant 0 : index
    %63 = vector.load %arg8[%c0_64, %c6_65, %c0_66, %c0_67] : memref<1x8x16x256xf32, #tpu.memory_space<vmem>>, vector<1x1x16x256xf32>
    %64 = vector.shape_cast %63 : vector<1x1x16x256xf32> to vector<16x256xf32>
    %65 = vector.shape_cast %62 : vector<16x256xf32> to vector<1x1x16x256xf32>
    tpu.vector_store %arg8[%c0_64, %c6_65, %c0_66, %c0_67], %65 {strides = array<i32>} : memref<1x8x16x256xf32, #tpu.memory_space<vmem>>, vector<1x1x16x256xf32>,
    %66 = vector.extract_strided_slice %8 {offsets = [112, 0], sizes = [16, 256], strides = [1, 1]} : vector<128x256xf32> to vector<16x256xf32>
    %c0_68 = arith.constant 0 : index
    %c7 = arith.constant 7 : index
    %c0_69 = arith.constant 0 : index
    %c0_70 = arith.constant 0 : index
    %67 = vector.load %arg3[%c0_68, %c7, %c0_69, %c0_70] : memref<1x8x16x256xf32, #tpu.memory_space<vmem>>, vector<1x1x16x256xf32>
    %68 = vector.shape_cast %67 : vector<1x1x16x256xf32> to vector<16x256xf32>
    %cst_71 = arith.constant dense<0.000000e+00> : vector<16x256xf32>
    %69 = tpu.matmul %9, %68, %cst_71 {dimension_numbers = #tpu.dot_dimension_numbers<[1], [0], [0], [1], [0, 0, 1, 1], [], []>} : vector<16x16xf32>, vector<16x256xf32>, vector<16x256xf32> -> vector<16x256xf32>
    %70 = arith.addf %66, %69 : vector<16x256xf32>
    %c0_72 = arith.constant 0 : index
    %c7_73 = arith.constant 7 : index
    %c0_74 = arith.constant 0 : index
    %c0_75 = arith.constant 0 : index
    %71 = vector.load %arg8[%c0_72, %c7_73, %c0_74, %c0_75] : memref<1x8x16x256xf32, #tpu.memory_space<vmem>>, vector<1x1x16x256xf32>
    %72 = vector.shape_cast %71 : vector<1x1x16x256xf32> to vector<16x256xf32>
    %73 = vector.shape_cast %70 : vector<16x256xf32> to vector<1x1x16x256xf32>
    tpu.vector_store %arg8[%c0_72, %c7_73, %c0_74, %c0_75], %73 {strides = array<i32>} : memref<1x8x16x256xf32, #tpu.memory_space<vmem>>, vector<1x1x16x256xf32>,
    return
  }
  func.func @transform_0(%arg0: i32, %arg1: i32) -> (i32, i32, i32) {
    %c0_i32 = arith.constant 0 : i32
    %c0_i32_0 = arith.constant 0 : i32
    return %arg0, %c0_i32, %arg1 : i32, i32, i32
  }
  func.func @transform_1(%arg0: i32, %arg1: i32) -> (i32, i32, i32, i32) {
    %c0_i32 = arith.constant 0 : i32
    %c0_i32_0 = arith.constant 0 : i32
    %c0_i32_1 = arith.constant 0 : i32
    return %arg0, %c0_i32, %c0_i32_0, %arg1 : i32, i32, i32, i32
  }
  func.func @transform_2(%arg0: i32, %arg1: i32) -> (i32, i32) {
    %c0_i32 = arith.constant 0 : i32
    %c0_i32_0 = arith.constant 0 : i32
    %c0_i32_1 = arith.constant 0 : i32
    return %c0_i32, %c0_i32_0 : i32, i32
  }
  func.func @transform_3(%arg0: i32, %arg1: i32) -> (i32, i32) {
    %c0_i32 = arith.constant 0 : i32
    %c0_i32_0 = arith.constant 0 : i32
    %c0_i32_1 = arith.constant 0 : i32
    return %c0_i32, %c0_i32_0 : i32, i32
  }
  func.func @transform_4(%arg0: i32, %arg1: i32) -> (i32, i32) {
    %c0_i32 = arith.constant 0 : i32
    %c0_i32_0 = arith.constant 0 : i32
    %c0_i32_1 = arith.constant 0 : i32
    return %c0_i32, %c0_i32_0 : i32, i32
  }
  func.func @transform_5(%arg0: i32, %arg1: i32) -> (i32, i32) {
    %c0_i32 = arith.constant 0 : i32
    %c0_i32_0 = arith.constant 0 : i32
    %c0_i32_1 = arith.constant 0 : i32
    return %c0_i32, %c0_i32_0 : i32, i32
  }
  func.func @transform_6(%arg0: i32, %arg1: i32) -> (i32, i32, i32, i32) {
    %c0_i32 = arith.constant 0 : i32
    %c0_i32_0 = arith.constant 0 : i32
    %c0_i32_1 = arith.constant 0 : i32
    return %arg0, %c0_i32, %c0_i32_0, %arg1 : i32, i32, i32, i32
  }
}

</mosaic_0001>

<llo_original>
// kernel: consecutive_conv_up.1
$region0: #{consecutive_conv_up.1}
  #allocation0 [shape = 'u32[]', space=smem, size = 0x4, offset = 0x4, fixed_abs, tag = 'smem constant byte address 0x4 - core index']
  #allocation1 [shape = 'u32[72,128]{1,0:T(1,128)}', space=vmem, size = 0x9000, scoped, tag = 'internal scratch']
  %s0 = inlined_call_operand.vmem [shape: f32[2,32,512], index: 0, kind: input, shape index: {}]
  %s1 = inlined_call_operand.vmem [shape: f32[2,8,16,512], index: 1, kind: input, shape index: {}]
  %s2 = inlined_call_operand.vmem [shape: f32[16,32], index: 2, kind: input, shape index: {}]
  %s3 = inlined_call_operand.vmem [shape: f32[128,16], index: 3, kind: input, shape index: {}]
  %s4 = inlined_call_operand.vmem [shape: f32[128,1], index: 4, kind: input, shape index: {}]
  %s5 = inlined_call_operand.vmem [shape: f32[16,16], index: 5, kind: input, shape index: {}]
  %s6 = inlined_call_operand.vmem [shape: f32[2,8,16,512], index: 6, kind: output, shape index: {}]
  %s7 = sld [smem:[#allocation0]]
  $region122: #{consecutive_conv_up.1} parent=0
    _
  %s9 = ssub.s32 1, %s7
  %s10 = scalar_select 0, %s9, %s7
  $region1: #{consecutive_conv_up.1} parent=0
    #allocation2 [shape = 'u8[65536]{0}', space=vmem, size = 0x10000, scoped, tag = 'input window, operand 0']
    #allocation3 [shape = 'u8[262144]{0}', space=vmem, size = 0x40000, scoped, tag = 'input window, operand 1']
    #allocation4 [shape = 'u8[262144]{0}', space=vmem, size = 0x40000, scoped, tag = 'output window, operand 0']
    loop: start=0, step=1, limit=6
    $region2: #{consecutive_conv_up.1} parent=1 // loop_pre_header
      _
    $region3: #{consecutive_conv_up.1} parent=1 // loop_header
      %s12 = sphi 0, %s16
      %p13 = scmp.ge.s32.totalorder %s12, 6
      %s19 = sphi 0, %s31
      %s20 = sphi 0, %s27
      %s21 = sphi 0, %s19
      %s22 = sphi 0, %s20
      %s23 = sphi 0, %s21
      %s24 = sphi 0, %s22
      %s36 = sphi 0, %s38
      %s39 = sphi 0, %s36
      %s40 = sphi 0, %s39
      %s56 = sphi 0, %s40
      %s64 = sphi 0, %s66
      %s67 = sphi 0, %s64
      %s68 = sphi 0, %s67
      %s84 = sphi 0, %s68
      %s88 = sphi 0, %s88
      %s90 = sphi 0, %s88
      %s91 = sphi 0, %s90
      %s105 = sphi 0, %s91
      %s109 = sphi 0, %s109
      %s111 = sphi 0, %s109
      %s112 = sphi 0, %s111
      %s126 = sphi 0, %s112
      %s130 = sphi 0, %s130
      %s132 = sphi 0, %s130
      %s133 = sphi 0, %s132
      %s147 = sphi 0, %s133
      %s151 = sphi 0, %s151
      %s153 = sphi 0, %s151
      %s154 = sphi 0, %s153
      %s168 = sphi 0, %s154
      %s176 = sphi 0, %s178
      %s179 = sphi 0, %s176
      %s180 = sphi 0, %s179
      %s196 = sphi 0, %s180
    $region4: #{consecutive_conv_up.1} parent=1 // loop_header_branch
      %15 = sbr.rel (%p13) target = $region8
    $region5: #{consecutive_conv_up.1} parent=1 // loop_body
      %s17 = ssub.s32 %s12, 1
      %s18 = ssub.s32 %s12, 2
      %s25 = sadd.s32 1, %s20
      %p26 = scmp.ge.s32.totalorder %s25, 2
      %s27 = scalar_select %p26, 0, %s25
      %s28 = sadd.s32 1, %s19
      %s29 = scalar_select %p26, %s28, %s19
      %p30 = scmp.ge.s32.totalorder %s29, 2
      %s31 = scalar_select %p30, 0, %s29
      %s32 = ssub.s32 %s19, %s31
      %s33 = ssub.s32 %s20, %s27
      %s34 = sor.u32 %s32, %s33
      %p35 = scmp.eq.s32.totalorder %s34, 0
      %s37 = sadd.s32 %s36, 1
      %s38 = scalar_select %p35, %s36, %s37
      %p41 = pneg %p35
      %p42 = scmp.eq.s32.totalorder %s12, 3
      %p43 = por %p41, %p42
      %p44 = scmp.ne.s32.totalorder %s36, %s39
      %p45 = scmp.eq.s32.totalorder %s12, 0
      %p46 = por %p44, %p45
      %p47 = scmp.ne.s32.totalorder %s36, %s39
      %p48 = scmp.eq.s32.totalorder %s17, 3
      %p49 = por %p47, %p48
      %p50 = scmp.ne.s32.totalorder %s39, %s40
      %p51 = scmp.eq.s32.totalorder %s17, 0
      %p52 = por %p50, %p51
      %p53 = scmp.ne.s32.totalorder %s39, %s40
      %p54 = scmp.eq.s32.totalorder %s18, 3
      %p55 = por %p53, %p54
      %p57 = scmp.ne.s32.totalorder %s40, %s56
      %p58 = scmp.eq.s32.totalorder %s18, 0
      %p59 = por %p57, %p58
      %s60 = ssub.s32 %s19, %s31
      %s61 = ssub.s32 %s20, %s27
      %s62 = sor.u32 %s60, %s61
      %p63 = scmp.eq.s32.totalorder %s62, 0
      %s65 = sadd.s32 %s64, 1
      %s66 = scalar_select %p63, %s64, %s65
      %p69 = pneg %p63
      %p70 = scmp.eq.s32.totalorder %s12, 3
      %p71 = por %p69, %p70
      %p72 = scmp.ne.s32.totalorder %s64, %s67
      %p73 = scmp.eq.s32.totalorder %s12, 0
      %p74 = por %p72, %p73
      %p75 = scmp.ne.s32.totalorder %s64, %s67
      %p76 = scmp.eq.s32.totalorder %s17, 3
      %p77 = por %p75, %p76
      %p78 = scmp.ne.s32.totalorder %s67, %s68
      %p79 = scmp.eq.s32.totalorder %s17, 0
      %p80 = por %p78, %p79
      %p81 = scmp.ne.s32.totalorder %s67, %s68
      %p82 = scmp.eq.s32.totalorder %s18, 3
      %p83 = por %p81, %p82
      %p85 = scmp.ne.s32.totalorder %s68, %s84
      %p86 = scmp.eq.s32.totalorder %s18, 0
      %p87 = por %p85, %p86
      %s89 = sadd.s32 %s88, 1
      %p92 = scmp.eq.s32.totalorder %s12, 3
      %p93 = scmp.ne.s32.totalorder %s88, %s90
      %p94 = scmp.eq.s32.totalorder %s12, 0
      %p95 = por %p93, %p94
      %p96 = scmp.ne.s32.totalorder %s88, %s90
      %p97 = scmp.eq.s32.totalorder %s17, 3
      %p98 = por %p96, %p97
      %p99 = scmp.ne.s32.totalorder %s90, %s91
      %p100 = scmp.eq.s32.totalorder %s17, 0
      %p101 = por %p99, %p100
      %p102 = scmp.ne.s32.totalorder %s90, %s91
      %p103 = scmp.eq.s32.totalorder %s18, 3
      %p104 = por %p102, %p103
      %p106 = scmp.ne.s32.totalorder %s91, %s105
      %p107 = scmp.eq.s32.totalorder %s18, 0
      %p108 = por %p106, %p107
      %s110 = sadd.s32 %s109, 1
      %p113 = scmp.eq.s32.totalorder %s12, 3
      %p114 = scmp.ne.s32.totalorder %s109, %s111
      %p115 = scmp.eq.s32.totalorder %s12, 0
      %p116 = por %p114, %p115
      %p117 = scmp.ne.s32.totalorder %s109, %s111
      %p118 = scmp.eq.s32.totalorder %s17, 3
      %p119 = por %p117, %p118
      %p120 = scmp.ne.s32.totalorder %s111, %s112
      %p121 = scmp.eq.s32.totalorder %s17, 0
      %p122 = por %p120, %p121
      %p123 = scmp.ne.s32.totalorder %s111, %s112
      %p124 = scmp.eq.s32.totalorder %s18, 3
      %p125 = por %p123, %p124
      %p127 = scmp.ne.s32.totalorder %s112, %s126
      %p128 = scmp.eq.s32.totalorder %s18, 0
      %p129 = por %p127, %p128
      %s131 = sadd.s32 %s130, 1
      %p134 = scmp.eq.s32.totalorder %s12, 3
      %p135 = scmp.ne.s32.totalorder %s130, %s132
      %p136 = scmp.eq.s32.totalorder %s12, 0
      %p137 = por %p135, %p136
      %p138 = scmp.ne.s32.totalorder %s130, %s132
      %p139 = scmp.eq.s32.totalorder %s17, 3
      %p140 = por %p138, %p139
      %p141 = scmp.ne.s32.totalorder %s132, %s133
      %p142 = scmp.eq.s32.totalorder %s17, 0
      %p143 = por %p141, %p142
      %p144 = scmp.ne.s32.totalorder %s132, %s133
      %p145 = scmp.eq.s32.totalorder %s18, 3
      %p146 = por %p144, %p145
      %p148 = scmp.ne.s32.totalorder %s133, %s147
      %p149 = scmp.eq.s32.totalorder %s18, 0
      %p150 = por %p148, %p149
      %s152 = sadd.s32 %s151, 1
      %p155 = scmp.eq.s32.totalorder %s12, 3
      %p156 = scmp.ne.s32.totalorder %s151, %s153
      %p157 = scmp.eq.s32.totalorder %s12, 0
      %p158 = por %p156, %p157
      %p159 = scmp.ne.s32.totalorder %s151, %s153
      %p160 = scmp.eq.s32.totalorder %s17, 3
      %p161 = por %p159, %p160
      %p162 = scmp.ne.s32.totalorder %s153, %s154
      %p163 = scmp.eq.s32.totalorder %s17, 0
      %p164 = por %p162, %p163
      %p165 = scmp.ne.s32.totalorder %s153, %s154
      %p166 = scmp.eq.s32.totalorder %s18, 3
      %p167 = por %p165, %p166
      %p169 = scmp.ne.s32.totalorder %s154, %s168
      %p170 = scmp.eq.s32.totalorder %s18, 0
      %p171 = por %p169, %p170
      %s172 = ssub.s32 %s19, %s31
      %s173 = ssub.s32 %s20, %s27
      %s174 = sor.u32 %s172, %s173
      %p175 = scmp.eq.s32.totalorder %s174, 0
      %s177 = sadd.s32 %s176, 1
      %s178 = scalar_select %p175, %s176, %s177
      %p181 = pneg %p175
      %p182 = scmp.eq.s32.totalorder %s12, 3
      %p183 = por %p181, %p182
      %p184 = scmp.ne.s32.totalorder %s176, %s179
      %p185 = scmp.eq.s32.totalorder %s12, 0
      %p186 = por %p184, %p185
      %p187 = scmp.ne.s32.totalorder %s176, %s179
      %p188 = scmp.eq.s32.totalorder %s17, 3
      %p189 = por %p187, %p188
      %p190 = scmp.ne.s32.totalorder %s179, %s180
      %p191 = scmp.eq.s32.totalorder %s17, 0
      %p192 = por %p190, %p191
      %p193 = scmp.ne.s32.totalorder %s179, %s180
      %p194 = scmp.eq.s32.totalorder %s18, 3
      %p195 = por %p193, %p194
      %p197 = scmp.ne.s32.totalorder %s180, %s196
      %p198 = scmp.eq.s32.totalorder %s18, 0
      %p199 = por %p197, %p198
      %p200 = scmp.le.s32.totalorder 1, %s12
      %p201 = scmp.lt.s32.totalorder %s12, 5
      %p202 = pnand %p200, %p201
      %p203 = pneg %p202
      // Predicated region
      $region9: #{consecutive_conv_up.1} parent=5 // pred_check
        _
      $region10: #{consecutive_conv_up.1} parent=5 // pred_check_branch
        %205 = sbr.rel (%p202) target = $region12
      $region11: #{consecutive_conv_up.1} parent=5 // pred_region
        %s206 = ssub.s32 %s12, 1
        // Predicated region
        $region13: #{consecutive_conv_up.1} parent=11 // pred_check
          %p207 = pneg %p101
        $region14: #{consecutive_conv_up.1} parent=11 // pred_check_branch
          %209 = sbr.rel (%p207) target = $region16
        $region15: #{consecutive_conv_up.1} parent=11 // pred_region
          _
        $region16: #{consecutive_conv_up.1} parent=11 // pred_fallthru
          _
        // Predicated region
        $region17: #{consecutive_conv_up.1} parent=11 // pred_check
          %p210 = pneg %p122
        $region18: #{consecutive_conv_up.1} parent=11 // pred_check_branch
          %212 = sbr.rel (%p210) target = $region20
        $region19: #{consecutive_conv_up.1} parent=11 // pred_region
          _
        $region20: #{consecutive_conv_up.1} parent=11 // pred_fallthru
          _
        // Predicated region
        $region21: #{consecutive_conv_up.1} parent=11 // pred_check
          %p213 = pneg %p143
        $region22: #{consecutive_conv_up.1} parent=11 // pred_check_branch
          %215 = sbr.rel (%p213) target = $region24
        $region23: #{consecutive_conv_up.1} parent=11 // pred_region
          _
        $region24: #{consecutive_conv_up.1} parent=11 // pred_fallthru
          _
        // Predicated region
        $region25: #{consecutive_conv_up.1} parent=11 // pred_check
          %p216 = pneg %p164
        $region26: #{consecutive_conv_up.1} parent=11 // pred_check_branch
          %218 = sbr.rel (%p216) target = $region28
        $region27: #{consecutive_conv_up.1} parent=11 // pred_region
          _
        $region28: #{consecutive_conv_up.1} parent=11 // pred_fallthru
          _
      $region12: #{consecutive_conv_up.1} parent=5 // pred_fallthru
        _
      %p219 = scmp.lt.s32.totalorder %s12, 4
      // Predicated region
      $region29: #{consecutive_conv_up.1} parent=5 // pred_check
        %p220 = pneg %p219
      $region30: #{consecutive_conv_up.1} parent=5 // pred_check_branch
        %222 = sbr.rel (%p220) target = $region32
      $region31: #{consecutive_conv_up.1} parent=5 // pred_region
        // Predicated region
        $region33: #{consecutive_conv_up.1} parent=31 // pred_check
          %p223 = pneg %p46
        $region34: #{consecutive_conv_up.1} parent=31 // pred_check_branch
          %225 = sbr.rel (%p223) target = $region36
        $region35: #{consecutive_conv_up.1} parent=31 // pred_region
          %s226 = sand.u32 %s36, 1
          %s227 = sand.u32 %s36, 1
          %s228 = smul.addr %s227, 64
          %s229 = scalar_lea.vmem [#allocation2], %s228
          %s230 = smul.u32 2, %s20
          %s231 = smul.addr %s19, 16
          %s232 = sadd.s32 %s230, %s231
          %s233 = smul.addr %s232, 8
          %s234 = scalar_lea.vmem %s0, %s233
          // Predicated region
          $region37: #{consecutive_conv_up.1} parent=35 // pred_check
            _
          $region38: #{consecutive_conv_up.1} parent=35 // pred_check_branch
            %236 = sbr.rel (0) target = $region40
          $region39: #{consecutive_conv_up.1} parent=35 // pred_region
            // Predicated region
            $region41: #{consecutive_conv_up.1} parent=39 // pred_check
              _
            $region42: #{consecutive_conv_up.1} parent=39 // pred_check_branch
              %238 = sbr.rel (0) target = $region44
            $region43: #{consecutive_conv_up.1} parent=39 // pred_region
              loop: start=0, step=1, limit=1
              $region45: #{consecutive_conv_up.1} parent=43 // loop_pre_header
                _
              $region46: #{consecutive_conv_up.1} parent=43 // loop_header
                %s240 = sphi 0, %s244
                %p241 = scmp.ge.s32.totalorder %s240, 1
                %s245 = sphi %s234, %s234
                %s246 = sphi %s229, %s229
              $region47: #{consecutive_conv_up.1} parent=43 // loop_header_branch
                %243 = sbr.rel (%p241) target = $region51
              $region48: #{consecutive_conv_up.1} parent=43 // loop_body
                %v247 = vld [vmem:[%s245] sm:$0xff]
                %248 = vst [vmem:[%s246] sm:$0xff] %v247
                %v249 = vld [vmem:[%s245 + $0x8] sm:$0xff]
                %250 = vst [vmem:[%s246 + $0x8] sm:$0xff] %v249
                %v251 = vld [vmem:[%s245 + $0x20] sm:$0xff]
                %252 = vst [vmem:[%s246 + $0x10] sm:$0xff] %v251
                %v253 = vld [vmem:[%s245 + $0x28] sm:$0xff]
                %254 = vst [vmem:[%s246 + $0x18] sm:$0xff] %v253
                %v255 = vld [vmem:[%s245 + $0x40] sm:$0xff]
                %256 = vst [vmem:[%s246 + $0x20] sm:$0xff] %v255
                %v257 = vld [vmem:[%s245 + $0x48] sm:$0xff]
                %258 = vst [vmem:[%s246 + $0x28] sm:$0xff] %v257
                %v259 = vld [vmem:[%s245 + $0x60] sm:$0xff]
                %260 = vst [vmem:[%s246 + $0x30] sm:$0xff] %v259
                %v261 = vld [vmem:[%s245 + $0x68] sm:$0xff]
                %262 = vst [vmem:[%s246 + $0x38] sm:$0xff] %v261
              $region49: #{consecutive_conv_up.1} parent=43 // loop_footer
                %s244 = sadd.s32 1, %s240
              $region50: #{consecutive_conv_up.1} parent=43 // loop_footer_branch
                %239 = sbr.rel target = $region46
              $region51: #{consecutive_conv_up.1} parent=43 // loop_exit
                _
            $region44: #{consecutive_conv_up.1} parent=39 // pred_fallthru
              _
            // Predicated region
            $region52: #{consecutive_conv_up.1} parent=39 // pred_check
              _
            $region53: #{consecutive_conv_up.1} parent=39 // pred_check_branch
              %264 = sbr.rel target = $region55
            $region54: #{consecutive_conv_up.1} parent=39 // pred_region
              _
            $region55: #{consecutive_conv_up.1} parent=39 // pred_fallthru
              _
          $region40: #{consecutive_conv_up.1} parent=35 // pred_fallthru
            _
          %265 = vnop
        $region36: #{consecutive_conv_up.1} parent=31 // pred_fallthru
          _
        // Predicated region
        $region56: #{consecutive_conv_up.1} parent=31 // pred_check
          %p266 = pneg %p74
        $region57: #{consecutive_conv_up.1} parent=31 // pred_check_branch
          %268 = sbr.rel (%p266) target = $region59
        $region58: #{consecutive_conv_up.1} parent=31 // pred_region
          %s269 = sand.u32 %s64, 1
          %s270 = sand.u32 %s64, 1
          %s271 = smul.addr %s270, 256
          %s272 = scalar_lea.vmem [#allocation3], %s271
          %s273 = smul.u32 2, %s20
          %s274 = smul.addr %s19, 64
          %s275 = sadd.s32 %s273, %s274
          %s276 = smul.addr %s275, 8
          %s277 = scalar_lea.vmem %s1, %s276
          // Predicated region
          $region60: #{consecutive_conv_up.1} parent=58 // pred_check
            _
          $region61: #{consecutive_conv_up.1} parent=58 // pred_check_branch
            %279 = sbr.rel (0) target = $region63
          $region62: #{consecutive_conv_up.1} parent=58 // pred_region
            // Predicated region
            $region64: #{consecutive_conv_up.1} parent=62 // pred_check
              _
            $region65: #{consecutive_conv_up.1} parent=62 // pred_check_branch
              %281 = sbr.rel (0) target = $region67
            $region66: #{consecutive_conv_up.1} parent=62 // pred_region
              loop: start=0, step=1, limit=1
              $region68: #{consecutive_conv_up.1} parent=66 // loop_pre_header
                _
              $region69: #{consecutive_conv_up.1} parent=66 // loop_header
                %s283 = sphi 0, %s287
                %p284 = scmp.ge.s32.totalorder %s283, 1
                %s288 = sphi %s277, %s277
                %s289 = sphi %s272, %s272
              $region70: #{consecutive_conv_up.1} parent=66 // loop_header_branch
                %286 = sbr.rel (%p284) target = $region74
              $region71: #{consecutive_conv_up.1} parent=66 // loop_body
                %v290 = vld [vmem:[%s288] sm:$0xff]
                %291 = vst [vmem:[%s289] sm:$0xff] %v290
                %v292 = vld [vmem:[%s288 + $0x8] sm:$0xff]
                %293 = vst [vmem:[%s289 + $0x8] sm:$0xff] %v292
                %v294 = vld [vmem:[%s288 + $0x20] sm:$0xff]
                %295 = vst [vmem:[%s289 + $0x10] sm:$0xff] %v294
                %v296 = vld [vmem:[%s288 + $0x28] sm:$0xff]
                %297 = vst [vmem:[%s289 + $0x18] sm:$0xff] %v296
                %v298 = vld [vmem:[%s288 + $0x40] sm:$0xff]
                %299 = vst [vmem:[%s289 + $0x20] sm:$0xff] %v298
                %v300 = vld [vmem:[%s288 + $0x48] sm:$0xff]
                %301 = vst [vmem:[%s289 + $0x28] sm:$0xff] %v300
                %v302 = vld [vmem:[%s288 + $0x60] sm:$0xff]
                %303 = vst [vmem:[%s289 + $0x30] sm:$0xff] %v302
                %v304 = vld [vmem:[%s288 + $0x68] sm:$0xff]
                %305 = vst [vmem:[%s289 + $0x38] sm:$0xff] %v304
                %v306 = vld [vmem:[%s288 + $0x80] sm:$0xff]
                %307 = vst [vmem:[%s289 + $0x40] sm:$0xff] %v306
                %v308 = vld [vmem:[%s288 + $0x88] sm:$0xff]
                %309 = vst [vmem:[%s289 + $0x48] sm:$0xff] %v308
                %v310 = vld [vmem:[%s288 + $0xa0] sm:$0xff]
                %311 = vst [vmem:[%s289 + $0x50] sm:$0xff] %v310
                %v312 = vld [vmem:[%s288 + $0xa8] sm:$0xff]
                %313 = vst [vmem:[%s289 + $0x58] sm:$0xff] %v312
                %v314 = vld [vmem:[%s288 + $0xc0] sm:$0xff]
                %315 = vst [vmem:[%s289 + $0x60] sm:$0xff] %v314
                %v316 = vld [vmem:[%s288 + $0xc8] sm:$0xff]
                %317 = vst [vmem:[%s289 + $0x68] sm:$0xff] %v316
                %v318 = vld [vmem:[%s288 + $0xe0] sm:$0xff]
                %319 = vst [vmem:[%s289 + $0x70] sm:$0xff] %v318
                %v320 = vld [vmem:[%s288 + $0xe8] sm:$0xff]
                %321 = vst [vmem:[%s289 + $0x78] sm:$0xff] %v320
                %v322 = vld [vmem:[%s288 + $0x100] sm:$0xff]
                %323 = vst [vmem:[%s289 + $0x80] sm:$0xff] %v322
                %v324 = vld [vmem:[%s288 + $0x108] sm:$0xff]
                %325 = vst [vmem:[%s289 + $0x88] sm:$0xff] %v324
                %v326 = vld [vmem:[%s288 + $0x120] sm:$0xff]
                %327 = vst [vmem:[%s289 + $0x90] sm:$0xff] %v326
                %v328 = vld [vmem:[%s288 + $0x128] sm:$0xff]
                %329 = vst [vmem:[%s289 + $0x98] sm:$0xff] %v328
                %v330 = vld [vmem:[%s288 + $0x140] sm:$0xff]
                %331 = vst [vmem:[%s289 + $0xa0] sm:$0xff] %v330
                %v332 = vld [vmem:[%s288 + $0x148] sm:$0xff]
                %333 = vst [vmem:[%s289 + $0xa8] sm:$0xff] %v332
                %v334 = vld [vmem:[%s288 + $0x160] sm:$0xff]
                %335 = vst [vmem:[%s289 + $0xb0] sm:$0xff] %v334
                %v336 = vld [vmem:[%s288 + $0x168] sm:$0xff]
                %337 = vst [vmem:[%s289 + $0xb8] sm:$0xff] %v336
                %v338 = vld [vmem:[%s288 + $0x180] sm:$0xff]
                %339 = vst [vmem:[%s289 + $0xc0] sm:$0xff] %v338
                %v340 = vld [vmem:[%s288 + $0x188] sm:$0xff]
                %341 = vst [vmem:[%s289 + $0xc8] sm:$0xff] %v340
                %v342 = vld [vmem:[%s288 + $0x1a0] sm:$0xff]
                %343 = vst [vmem:[%s289 + $0xd0] sm:$0xff] %v342
                %v344 = vld [vmem:[%s288 + $0x1a8] sm:$0xff]
                %345 = vst [vmem:[%s289 + $0xd8] sm:$0xff] %v344
                %v346 = vld [vmem:[%s288 + $0x1c0] sm:$0xff]
                %347 = vst [vmem:[%s289 + $0xe0] sm:$0xff] %v346
                %v348 = vld [vmem:[%s288 + $0x1c8] sm:$0xff]
                %349 = vst [vmem:[%s289 + $0xe8] sm:$0xff] %v348
                %v350 = vld [vmem:[%s288 + $0x1e0] sm:$0xff]
                %351 = vst [vmem:[%s289 + $0xf0] sm:$0xff] %v350
                %v352 = vld [vmem:[%s288 + $0x1e8] sm:$0xff]
                %353 = vst [vmem:[%s289 + $0xf8] sm:$0xff] %v352
              $region72: #{consecutive_conv_up.1} parent=66 // loop_footer
                %s287 = sadd.s32 1, %s283
              $region73: #{consecutive_conv_up.1} parent=66 // loop_footer_branch
                %282 = sbr.rel target = $region69
              $region74: #{consecutive_conv_up.1} parent=66 // loop_exit
                _
            $region67: #{consecutive_conv_up.1} parent=62 // pred_fallthru
              _
            // Predicated region
            $region75: #{consecutive_conv_up.1} parent=62 // pred_check
              _
            $region76: #{consecutive_conv_up.1} parent=62 // pred_check_branch
              %355 = sbr.rel target = $region78
            $region77: #{consecutive_conv_up.1} parent=62 // pred_region
              _
            $region78: #{consecutive_conv_up.1} parent=62 // pred_fallthru
              _
          $region63: #{consecutive_conv_up.1} parent=58 // pred_fallthru
            _
          %356 = vnop
        $region59: #{consecutive_conv_up.1} parent=31 // pred_fallthru
          _
      $region32: #{consecutive_conv_up.1} parent=5 // pred_fallthru
        _
      %p357 = scmp.le.s32.totalorder 1, %s12
      %p358 = scmp.lt.s32.totalorder %s12, 5
      %p359 = pnand %p357, %p358
      %p360 = pneg %p359
      // Predicated region
      $region79: #{consecutive_conv_up.1} parent=5 // pred_check
        _
      $region80: #{consecutive_conv_up.1} parent=5 // pred_check_branch
        %362 = sbr.rel (%p359) target = $region82
      $region81: #{consecutive_conv_up.1} parent=5 // pred_region
        %s363 = ssub.s32 %s12, 1
        %s364 = sand.u32 %s39, 1
        %s365 = sand.u32 %s39, 1
        %s366 = smul.addr %s365, 64
        %s367 = scalar_lea.vmem [#allocation2], %s366
        // Predicated region
        $region83: #{consecutive_conv_up.1} parent=81 // pred_check
          %p368 = pneg %p52
        $region84: #{consecutive_conv_up.1} parent=81 // pred_check_branch
          %370 = sbr.rel (%p368) target = $region86
        $region85: #{consecutive_conv_up.1} parent=81 // pred_region
          _
        $region86: #{consecutive_conv_up.1} parent=81 // pred_fallthru
          _
        %s371 = sand.u32 %s67, 1
        %s372 = sand.u32 %s67, 1
        %s373 = smul.addr %s372, 256
        %s374 = scalar_lea.vmem [#allocation3], %s373
        // Predicated region
        $region87: #{consecutive_conv_up.1} parent=81 // pred_check
          %p375 = pneg %p80
        $region88: #{consecutive_conv_up.1} parent=81 // pred_check_branch
          %377 = sbr.rel (%p375) target = $region90
        $region89: #{consecutive_conv_up.1} parent=81 // pred_region
          _
        $region90: #{consecutive_conv_up.1} parent=81 // pred_fallthru
          _
        %s378 = sand.u32 %s39, 1
        %s379 = sand.u32 %s39, 1
        %s380 = smul.addr %s379, 64
        %s381 = scalar_lea.vmem [#allocation2], %s380
        %p382 = pneg %p52
        %p383 = pneg %p49
        %s384 = sand.u32 %s67, 1
        %s385 = sand.u32 %s67, 1
        %s386 = smul.addr %s385, 256
        %s387 = scalar_lea.vmem [#allocation3], %s386
        %p388 = pneg %p80
        %p389 = pneg %p77
        %p390 = pneg %p101
        %p391 = pneg %p98
        %p392 = pneg %p122
        %p393 = pneg %p119
        %p394 = pneg %p143
        %p395 = pneg %p140
        %p396 = pneg %p164
        %p397 = pneg %p161
        %p398 = pneg %p192
        %p399 = pneg %p189
        %s400 = sand.u32 %s179, 1
        %s401 = sand.u32 %s179, 1
        %s402 = smul.addr %s401, 256
        %s403 = scalar_lea.vmem [#allocation4], %s402
        %s404 = smul.u32 2, %s22
        %s405 = smul.u32 2, %s22
        %s406 = smul.u32 2, %s22
        %v407 = vld [vmem:[%s2] sm:$0xff]
        %v408 = vld [vmem:[%s2 + $0x8] sm:$0xff]
        %v409 = vld [vmem:[%s367] sm:$0xff]
        %v410 = vld [vmem:[%s367 + $0x8] sm:$0xff]
        %v411 = vld [vmem:[%s367 + $0x10] sm:$0xff]
        %v412 = vld [vmem:[%s367 + $0x18] sm:$0xff]
        %v413 = vld [vmem:[%s367 + $0x20] sm:$0xff]
        %v414 = vld [vmem:[%s367 + $0x28] sm:$0xff]
        %v415 = vld [vmem:[%s367 + $0x30] sm:$0xff]
        %v416 = vld [vmem:[%s367 + $0x38] sm:$0xff]
        %vm417 = vcmask 261120
        %v419 = vsel %vm417, %v407, 0
        %v422 = vsel %vm417, %v408, 0
        %424 = vmatpush.msra.mxu0 0.0
        %425 = vmatpush.msra.mxu0 0.0
        %426 = vmatpush.msra.mxu0 0.0
        %427 = vmatpush.msra.mxu0 0.0
        %428 = vmatpush.msra.mxu0 0.0
        %429 = vmatpush.msra.mxu0 0.0
        %430 = vmatpush.msra.mxu0 0.0
        %431 = vmatpush.msra.mxu0 0.0
        %432 = vmatpush.msra.mxu0 0.0
        %433 = vmatpush.msra.mxu0 0.0
        %434 = vmatpush.msra.mxu0 0.0
        %435 = vmatpush.msra.mxu0 0.0
        %436 = vmatpush.msra.mxu0 %v415
        %437 = vmatpush.msra.mxu0 %v413
        %438 = vmatpush.msra.mxu0 %v411
        %439 = vmatpush.msra.mxu0 %v409
        %440 = vmatmul.f32.gmra.mxu0 %v419
        %v441 = vpop.f32.mrf.mxu0
        %v442 = vadd.f32 0.0, %v441
        %443 = vmatmul.f32.gmra.mxu0 %v422
        %v444 = vpop.f32.mrf.mxu0
        %v445 = vadd.f32 0.0, %v444
        %446 = vdwg.mxu0
        %447 = vmatpush.msra.mxu0 0.0
        %448 = vmatpush.msra.mxu0 0.0
        %449 = vmatpush.msra.mxu0 0.0
        %450 = vmatpush.msra.mxu0 0.0
        %451 = vmatpush.msra.mxu0 0.0
        %452 = vmatpush.msra.mxu0 0.0
        %453 = vmatpush.msra.mxu0 0.0
        %454 = vmatpush.msra.mxu0 0.0
        %455 = vmatpush.msra.mxu0 0.0
        %456 = vmatpush.msra.mxu0 0.0
        %457 = vmatpush.msra.mxu0 0.0
        %458 = vmatpush.msra.mxu0 0.0
        %459 = vmatpush.msra.mxu0 %v416
        %460 = vmatpush.msra.mxu0 %v414
        %461 = vmatpush.msra.mxu0 %v412
        %462 = vmatpush.msra.mxu0 %v410
        %463 = vmatmul.f32.gmra.mxu0 %v419
        %v464 = vpop.f32.mrf.mxu0
        %v465 = vadd.f32 0.0, %v464
        %466 = vmatmul.f32.gmra.mxu0 %v422
        %v467 = vpop.f32.mrf.mxu0
        %v468 = vadd.f32 0.0, %v467
        %469 = vdwg.mxu0
        %v470 = vld [vmem:[%s3] sm:$0xff]
        %v471 = vld [vmem:[%s3 + $0x8] sm:$0xff]
        %v472 = vld [vmem:[%s3 + $0x10] sm:$0xff]
        %v473 = vld [vmem:[%s3 + $0x18] sm:$0xff]
        %v474 = vld [vmem:[%s3 + $0x20] sm:$0xff]
        %v475 = vld [vmem:[%s3 + $0x28] sm:$0xff]
        %v476 = vld [vmem:[%s3 + $0x30] sm:$0xff]
        %v477 = vld [vmem:[%s3 + $0x38] sm:$0xff]
        %v478 = vld [vmem:[%s3 + $0x40] sm:$0xff]
        %v479 = vld [vmem:[%s3 + $0x48] sm:$0xff]
        %v480 = vld [vmem:[%s3 + $0x50] sm:$0xff]
        %v481 = vld [vmem:[%s3 + $0x58] sm:$0xff]
        %v482 = vld [vmem:[%s3 + $0x60] sm:$0xff]
        %v483 = vld [vmem:[%s3 + $0x68] sm:$0xff]
        %v484 = vld [vmem:[%s3 + $0x70] sm:$0xff]
        %v485 = vld [vmem:[%s3 + $0x78] sm:$0xff]
        %v486 = vld [vmem:[%s4] sm:$0xff]
        %v487 = vld [vmem:[%s4 + $0x8] sm:$0xff]
        %v488 = vld [vmem:[%s4 + $0x10] sm:$0xff]
        %v489 = vld [vmem:[%s4 + $0x18] sm:$0xff]
        %v490 = vld [vmem:[%s4 + $0x20] sm:$0xff]
        %v491 = vld [vmem:[%s4 + $0x28] sm:$0xff]
        %v492 = vld [vmem:[%s4 + $0x30] sm:$0xff]
        %v493 = vld [vmem:[%s4 + $0x38] sm:$0xff]
        %v494 = vld [vmem:[%s4 + $0x40] sm:$0xff]
        %v495 = vld [vmem:[%s4 + $0x48] sm:$0xff]
        %v496 = vld [vmem:[%s4 + $0x50] sm:$0xff]
        %v497 = vld [vmem:[%s4 + $0x58] sm:$0xff]
        %v498 = vld [vmem:[%s4 + $0x60] sm:$0xff]
        %v499 = vld [vmem:[%s4 + $0x68] sm:$0xff]
        %v500 = vld [vmem:[%s4 + $0x70] sm:$0xff]
        %v501 = vld [vmem:[%s4 + $0x78] sm:$0xff]
        %503 = vset.pattern.permute.xlu0 0
        %504 = vperm.xlu0 %503, %v486
        %v505 = vpop.permute.xlu0 %504
        %508 = vset.pattern.permute.xlu0 0
        %509 = vperm.xlu0 %508, %v487
        %v510 = vpop.permute.xlu0 %509
        %513 = vset.pattern.permute.xlu0 0
        %514 = vperm.xlu0 %513, %v488
        %v515 = vpop.permute.xlu0 %514
        %518 = vset.pattern.permute.xlu0 0
        %519 = vperm.xlu0 %518, %v489
        %v520 = vpop.permute.xlu0 %519
        %523 = vset.pattern.permute.xlu0 0
        %524 = vperm.xlu0 %523, %v490
        %v525 = vpop.permute.xlu0 %524
        %528 = vset.pattern.permute.xlu0 0
        %529 = vperm.xlu0 %528, %v491
        %v530 = vpop.permute.xlu0 %529
        %533 = vset.pattern.permute.xlu0 0
        %534 = vperm.xlu0 %533, %v492
        %v535 = vpop.permute.xlu0 %534
        %538 = vset.pattern.permute.xlu0 0
        %539 = vperm.xlu0 %538, %v493
        %v540 = vpop.permute.xlu0 %539
        %543 = vset.pattern.permute.xlu0 0
        %544 = vperm.xlu0 %543, %v494
        %v545 = vpop.permute.xlu0 %544
        %548 = vset.pattern.permute.xlu0 0
        %549 = vperm.xlu0 %548, %v495
        %v550 = vpop.permute.xlu0 %549
        %553 = vset.pattern.permute.xlu0 0
        %554 = vperm.xlu0 %553, %v496
        %v555 = vpop.permute.xlu0 %554
        %558 = vset.pattern.permute.xlu0 0
        %559 = vperm.xlu0 %558, %v497
        %v560 = vpop.permute.xlu0 %559
        %563 = vset.pattern.permute.xlu0 0
        %564 = vperm.xlu0 %563, %v498
        %v565 = vpop.permute.xlu0 %564
        %568 = vset.pattern.permute.xlu0 0
        %569 = vperm.xlu0 %568, %v499
        %v570 = vpop.permute.xlu0 %569
        %573 = vset.pattern.permute.xlu0 0
        %574 = vperm.xlu0 %573, %v500
        %v575 = vpop.permute.xlu0 %574
        %578 = vset.pattern.permute.xlu0 0
        %579 = vperm.xlu0 %578, %v501
        %v580 = vpop.permute.xlu0 %579
        %vm582 = vcmask 130048
        %v584 = vsel %vm582, %v470, 0
        %v587 = vsel %vm582, %v471, 0
        %v590 = vsel %vm582, %v472, 0
        %v593 = vsel %vm582, %v473, 0
        %v596 = vsel %vm582, %v474, 0
        %v599 = vsel %vm582, %v475, 0
        %v602 = vsel %vm582, %v476, 0
        %v605 = vsel %vm582, %v477, 0
        %v608 = vsel %vm582, %v478, 0
        %v611 = vsel %vm582, %v479, 0
        %v614 = vsel %vm582, %v480, 0
        %v617 = vsel %vm582, %v481, 0
        %v620 = vsel %vm582, %v482, 0
        %v623 = vsel %vm582, %v483, 0
        %v626 = vsel %vm582, %v484, 0
        %v629 = vsel %vm582, %v485, 0
        %631 = vmatpush.msra.mxu0 0.0
        %632 = vmatpush.msra.mxu0 0.0
        %633 = vmatpush.msra.mxu0 0.0
        %634 = vmatpush.msra.mxu0 0.0
        %635 = vmatpush.msra.mxu0 0.0
        %636 = vmatpush.msra.mxu0 0.0
        %637 = vmatpush.msra.mxu0 0.0
        %638 = vmatpush.msra.mxu0 0.0
        %639 = vmatpush.msra.mxu0 0.0
        %640 = vmatpush.msra.mxu0 0.0
        %641 = vmatpush.msra.mxu0 0.0
        %642 = vmatpush.msra.mxu0 0.0
        %643 = vmatpush.msra.mxu0 0.0
        %644 = vmatpush.msra.mxu0 0.0
        %645 = vmatpush.msra.mxu0 %v445
        %646 = vmatpush.msra.mxu0 %v442
        %647 = vmatmul.f32.gmra.mxu0 %v584
        %v648 = vpop.f32.mrf.mxu0
        %v649 = vadd.f32 %v505, %v648
        %650 = vmatmul.f32.gmra.mxu0 %v587
        %v651 = vpop.f32.mrf.mxu0
        %v652 = vadd.f32 %v510, %v651
        %653 = vmatmul.f32.gmra.mxu0 %v590
        %v654 = vpop.f32.mrf.mxu0
        %v655 = vadd.f32 %v515, %v654
        %656 = vmatmul.f32.gmra.mxu0 %v593
        %v657 = vpop.f32.mrf.mxu0
        %v658 = vadd.f32 %v520, %v657
        %659 = vmatmul.f32.gmra.mxu0 %v596
        %v660 = vpop.f32.mrf.mxu0
        %v661 = vadd.f32 %v525, %v660
        %662 = vmatmul.f32.gmra.mxu0 %v599
        %v663 = vpop.f32.mrf.mxu0
        %v664 = vadd.f32 %v530, %v663
        %665 = vmatmul.f32.gmra.mxu0 %v602
        %v666 = vpop.f32.mrf.mxu0
        %v667 = vadd.f32 %v535, %v666
        %668 = vmatmul.f32.gmra.mxu0 %v605
        %v669 = vpop.f32.mrf.mxu0
        %v670 = vadd.f32 %v540, %v669
        %671 = vmatmul.f32.gmra.mxu0 %v608
        %v672 = vpop.f32.mrf.mxu0
        %v673 = vadd.f32 %v545, %v672
        %674 = vmatmul.f32.gmra.mxu0 %v611
        %v675 = vpop.f32.mrf.mxu0
        %v676 = vadd.f32 %v550, %v675
        %677 = vmatmul.f32.gmra.mxu0 %v614
        %v678 = vpop.f32.mrf.mxu0
        %v679 = vadd.f32 %v555, %v678
        %680 = vmatmul.f32.gmra.mxu0 %v617
        %v681 = vpop.f32.mrf.mxu0
        %v682 = vadd.f32 %v560, %v681
        %683 = vmatmul.f32.gmra.mxu0 %v620
        %v684 = vpop.f32.mrf.mxu0
        %v685 = vadd.f32 %v565, %v684
        %686 = vmatmul.f32.gmra.mxu0 %v623
        %v687 = vpop.f32.mrf.mxu0
        %v688 = vadd.f32 %v570, %v687
        %689 = vmatmul.f32.gmra.mxu0 %v626
        %v690 = vpop.f32.mrf.mxu0
        %v691 = vadd.f32 %v575, %v690
        %692 = vmatmul.f32.gmra.mxu0 %v629
        %v693 = vpop.f32.mrf.mxu0
        %v694 = vadd.f32 %v580, %v693
        %695 = vdwg.mxu0
        %696 = vmatpush.msra.mxu0 0.0
        %697 = vmatpush.msra.mxu0 0.0
        %698 = vmatpush.msra.mxu0 0.0
        %699 = vmatpush.msra.mxu0 0.0
        %700 = vmatpush.msra.mxu0 0.0
        %701 = vmatpush.msra.mxu0 0.0
        %702 = vmatpush.msra.mxu0 0.0
        %703 = vmatpush.msra.mxu0 0.0
        %704 = vmatpush.msra.mxu0 0.0
        %705 = vmatpush.msra.mxu0 0.0
        %706 = vmatpush.msra.mxu0 0.0
        %707 = vmatpush.msra.mxu0 0.0
        %708 = vmatpush.msra.mxu0 0.0
        %709 = vmatpush.msra.mxu0 0.0
        %710 = vmatpush.msra.mxu0 %v468
        %711 = vmatpush.msra.mxu0 %v465
        %712 = vmatmul.f32.gmra.mxu0 %v584
        %v713 = vpop.f32.mrf.mxu0
        %v714 = vadd.f32 %v505, %v713
        %715 = vmatmul.f32.gmra.mxu0 %v587
        %v716 = vpop.f32.mrf.mxu0
        %v717 = vadd.f32 %v510, %v716
        %718 = vmatmul.f32.gmra.mxu0 %v590
        %v719 = vpop.f32.mrf.mxu0
        %v720 = vadd.f32 %v515, %v719
        %721 = vmatmul.f32.gmra.mxu0 %v593
        %v722 = vpop.f32.mrf.mxu0
        %v723 = vadd.f32 %v520, %v722
        %724 = vmatmul.f32.gmra.mxu0 %v596
        %v725 = vpop.f32.mrf.mxu0
        %v726 = vadd.f32 %v525, %v725
        %727 = vmatmul.f32.gmra.mxu0 %v599
        %v728 = vpop.f32.mrf.mxu0
        %v729 = vadd.f32 %v530, %v728
        %730 = vmatmul.f32.gmra.mxu0 %v602
        %v731 = vpop.f32.mrf.mxu0
        %v732 = vadd.f32 %v535, %v731
        %733 = vmatmul.f32.gmra.mxu0 %v605
        %v734 = vpop.f32.mrf.mxu0
        %v735 = vadd.f32 %v540, %v734
        %736 = vmatmul.f32.gmra.mxu0 %v608
        %v737 = vpop.f32.mrf.mxu0
        %v738 = vadd.f32 %v545, %v737
        %739 = vmatmul.f32.gmra.mxu0 %v611
        %v740 = vpop.f32.mrf.mxu0
        %v741 = vadd.f32 %v550, %v740
        %742 = vmatmul.f32.gmra.mxu0 %v614
        %v743 = vpop.f32.mrf.mxu0
        %v744 = vadd.f32 %v555, %v743
        %745 = vmatmul.f32.gmra.mxu0 %v617
        %v746 = vpop.f32.mrf.mxu0
        %v747 = vadd.f32 %v560, %v746
        %748 = vmatmul.f32.gmra.mxu0 %v620
        %v749 = vpop.f32.mrf.mxu0
        %v750 = vadd.f32 %v565, %v749
        %751 = vmatmul.f32.gmra.mxu0 %v623
        %v752 = vpop.f32.mrf.mxu0
        %v753 = vadd.f32 %v570, %v752
        %754 = vmatmul.f32.gmra.mxu0 %v626
        %v755 = vpop.f32.mrf.mxu0
        %v756 = vadd.f32 %v575, %v755
        %757 = vmatmul.f32.gmra.mxu0 %v629
        %v758 = vpop.f32.mrf.mxu0
        %v759 = vadd.f32 %v580, %v758
        %760 = vdwg.mxu0
        %v761 = vld [vmem:[%s5] sm:$0xff]
        %v762 = vld [vmem:[%s5 + $0x8] sm:$0xff]
        %v763 = vld [vmem:[%s374] sm:$0xff]
        %v764 = vld [vmem:[%s374 + $0x8] sm:$0xff]
        %v765 = vld [vmem:[%s374 + $0x10] sm:$0xff]
        %v766 = vld [vmem:[%s374 + $0x18] sm:$0xff]
        %v768 = vsel %vm582, %v761, 0
        %v771 = vsel %vm582, %v762, 0
        %773 = vmatpush.msra.mxu0 0.0
        %774 = vmatpush.msra.mxu0 0.0
        %775 = vmatpush.msra.mxu0 0.0
        %776 = vmatpush.msra.mxu0 0.0
        %777 = vmatpush.msra.mxu0 0.0
        %778 = vmatpush.msra.mxu0 0.0
        %779 = vmatpush.msra.mxu0 0.0
        %780 = vmatpush.msra.mxu0 0.0
        %781 = vmatpush.msra.mxu0 0.0
        %782 = vmatpush.msra.mxu0 0.0
        %783 = vmatpush.msra.mxu0 0.0
        %784 = vmatpush.msra.mxu0 0.0
        %785 = vmatpush.msra.mxu0 0.0
        %786 = vmatpush.msra.mxu0 0.0
        %787 = vmatpush.msra.mxu0 %v765
        %788 = vmatpush.msra.mxu0 %v763
        %789 = vmatmul.f32.gmra.mxu0 %v768
        %v790 = vpop.f32.mrf.mxu0
        %v791 = vadd.f32 0.0, %v790
        %792 = vmatmul.f32.gmra.mxu0 %v771
        %v793 = vpop.f32.mrf.mxu0
        %v794 = vadd.f32 0.0, %v793
        %795 = vdwg.mxu0
        %796 = vmatpush.msra.mxu0 0.0
        %797 = vmatpush.msra.mxu0 0.0
        %798 = vmatpush.msra.mxu0 0.0
        %799 = vmatpush.msra.mxu0 0.0
        %800 = vmatpush.msra.mxu0 0.0
        %801 = vmatpush.msra.mxu0 0.0
        %802 = vmatpush.msra.mxu0 0.0
        %803 = vmatpush.msra.mxu0 0.0
        %804 = vmatpush.msra.mxu0 0.0
        %805 = vmatpush.msra.mxu0 0.0
        %806 = vmatpush.msra.mxu0 0.0
        %807 = vmatpush.msra.mxu0 0.0
        %808 = vmatpush.msra.mxu0 0.0
        %809 = vmatpush.msra.mxu0 0.0
        %810 = vmatpush.msra.mxu0 %v766
        %811 = vmatpush.msra.mxu0 %v764
        %812 = vmatmul.f32.gmra.mxu0 %v768
        %v813 = vpop.f32.mrf.mxu0
        %v814 = vadd.f32 0.0, %v813
        %815 = vmatmul.f32.gmra.mxu0 %v771
        %v816 = vpop.f32.mrf.mxu0
        %v817 = vadd.f32 0.0, %v816
        %818 = vdwg.mxu0
        %v819 = vadd.f32 %v649, %v791
        %v820 = vadd.f32 %v714, %v814
        %v821 = vadd.f32 %v652, %v794
        %v822 = vadd.f32 %v717, %v817
        %823 = vst [vmem:[%s403] sm:$0xff] %v819
        %824 = vst [vmem:[%s403 + $0x8] sm:$0xff] %v820
        %825 = vst [vmem:[%s403 + $0x10] sm:$0xff] %v821
        %826 = vst [vmem:[%s403 + $0x18] sm:$0xff] %v822
        %s827 = scalar_lea.vmem %s374, 32 [#allocation3]
        %v828 = vld [vmem:[%s827] sm:$0xff]
        %v829 = vld [vmem:[%s827 + $0x8] sm:$0xff]
        %v830 = vld [vmem:[%s827 + $0x10] sm:$0xff]
        %v831 = vld [vmem:[%s827 + $0x18] sm:$0xff]
        %832 = vmatpush.msra.mxu0 0.0
        %833 = vmatpush.msra.mxu0 0.0
        %834 = vmatpush.msra.mxu0 0.0
        %835 = vmatpush.msra.mxu0 0.0
        %836 = vmatpush.msra.mxu0 0.0
        %837 = vmatpush.msra.mxu0 0.0
        %838 = vmatpush.msra.mxu0 0.0
        %839 = vmatpush.msra.mxu0 0.0
        %840 = vmatpush.msra.mxu0 0.0
        %841 = vmatpush.msra.mxu0 0.0
        %842 = vmatpush.msra.mxu0 0.0
        %843 = vmatpush.msra.mxu0 0.0
        %844 = vmatpush.msra.mxu0 0.0
        %845 = vmatpush.msra.mxu0 0.0
        %846 = vmatpush.msra.mxu0 %v830
        %847 = vmatpush.msra.mxu0 %v828
        %848 = vmatmul.f32.gmra.mxu0 %v768
        %v849 = vpop.f32.mrf.mxu0
        %v850 = vadd.f32 0.0, %v849
        %851 = vmatmul.f32.gmra.mxu0 %v771
        %v852 = vpop.f32.mrf.mxu0
        %v853 = vadd.f32 0.0, %v852
        %854 = vdwg.mxu0
        %855 = vmatpush.msra.mxu0 0.0
        %856 = vmatpush.msra.mxu0 0.0
        %857 = vmatpush.msra.mxu0 0.0
        %858 = vmatpush.msra.mxu0 0.0
        %859 = vmatpush.msra.mxu0 0.0
        %860 = vmatpush.msra.mxu0 0.0
        %861 = vmatpush.msra.mxu0 0.0
        %862 = vmatpush.msra.mxu0 0.0
        %863 = vmatpush.msra.mxu0 0.0
        %864 = vmatpush.msra.mxu0 0.0
        %865 = vmatpush.msra.mxu0 0.0
        %866 = vmatpush.msra.mxu0 0.0
        %867 = vmatpush.msra.mxu0 0.0
        %868 = vmatpush.msra.mxu0 0.0
        %869 = vmatpush.msra.mxu0 %v831
        %870 = vmatpush.msra.mxu0 %v829
        %871 = vmatmul.f32.gmra.mxu0 %v768
        %v872 = vpop.f32.mrf.mxu0
        %v873 = vadd.f32 0.0, %v872
        %874 = vmatmul.f32.gmra.mxu0 %v771
        %v875 = vpop.f32.mrf.mxu0
        %v876 = vadd.f32 0.0, %v875
        %877 = vdwg.mxu0
        %v878 = vadd.f32 %v655, %v850
        %v879 = vadd.f32 %v720, %v873
        %v880 = vadd.f32 %v658, %v853
        %v881 = vadd.f32 %v723, %v876
        %s882 = scalar_lea.vmem %s403, 32 [#allocation4]
        %883 = vst [vmem:[%s882] sm:$0xff] %v878
        %884 = vst [vmem:[%s882 + $0x8] sm:$0xff] %v879
        %885 = vst [vmem:[%s882 + $0x10] sm:$0xff] %v880
        %886 = vst [vmem:[%s882 + $0x18] sm:$0xff] %v881
        %s887 = scalar_lea.vmem %s374, 64 [#allocation3]
        %v888 = vld [vmem:[%s887] sm:$0xff]
        %v889 = vld [vmem:[%s887 + $0x8] sm:$0xff]
        %v890 = vld [vmem:[%s887 + $0x10] sm:$0xff]
        %v891 = vld [vmem:[%s887 + $0x18] sm:$0xff]
        %892 = vmatpush.msra.mxu0 0.0
        %893 = vmatpush.msra.mxu0 0.0
        %894 = vmatpush.msra.mxu0 0.0
        %895 = vmatpush.msra.mxu0 0.0
        %896 = vmatpush.msra.mxu0 0.0
        %897 = vmatpush.msra.mxu0 0.0
        %898 = vmatpush.msra.mxu0 0.0
        %899 = vmatpush.msra.mxu0 0.0
        %900 = vmatpush.msra.mxu0 0.0
        %901 = vmatpush.msra.mxu0 0.0
        %902 = vmatpush.msra.mxu0 0.0
        %903 = vmatpush.msra.mxu0 0.0
        %904 = vmatpush.msra.mxu0 0.0
        %905 = vmatpush.msra.mxu0 0.0
        %906 = vmatpush.msra.mxu0 %v890
        %907 = vmatpush.msra.mxu0 %v888
        %908 = vmatmul.f32.gmra.mxu0 %v768
        %v909 = vpop.f32.mrf.mxu0
        %v910 = vadd.f32 0.0, %v909
        %911 = vmatmul.f32.gmra.mxu0 %v771
        %v912 = vpop.f32.mrf.mxu0
        %v913 = vadd.f32 0.0, %v912
        %914 = vdwg.mxu0
        %915 = vmatpush.msra.mxu0 0.0
        %916 = vmatpush.msra.mxu0 0.0
        %917 = vmatpush.msra.mxu0 0.0
        %918 = vmatpush.msra.mxu0 0.0
        %919 = vmatpush.msra.mxu0 0.0
        %920 = vmatpush.msra.mxu0 0.0
        %921 = vmatpush.msra.mxu0 0.0
        %922 = vmatpush.msra.mxu0 0.0
        %923 = vmatpush.msra.mxu0 0.0
        %924 = vmatpush.msra.mxu0 0.0
        %925 = vmatpush.msra.mxu0 0.0
        %926 = vmatpush.msra.mxu0 0.0
        %927 = vmatpush.msra.mxu0 0.0
        %928 = vmatpush.msra.mxu0 0.0
        %929 = vmatpush.msra.mxu0 %v891
        %930 = vmatpush.msra.mxu0 %v889
        %931 = vmatmul.f32.gmra.mxu0 %v768
        %v932 = vpop.f32.mrf.mxu0
        %v933 = vadd.f32 0.0, %v932
        %934 = vmatmul.f32.gmra.mxu0 %v771
        %v935 = vpop.f32.mrf.mxu0
        %v936 = vadd.f32 0.0, %v935
        %937 = vdwg.mxu0
        %v938 = vadd.f32 %v661, %v910
        %v939 = vadd.f32 %v726, %v933
        %v940 = vadd.f32 %v664, %v913
        %v941 = vadd.f32 %v729, %v936
        %s942 = scalar_lea.vmem %s403, 64 [#allocation4]
        %943 = vst [vmem:[%s942] sm:$0xff] %v938
        %944 = vst [vmem:[%s942 + $0x8] sm:$0xff] %v939
        %945 = vst [vmem:[%s942 + $0x10] sm:$0xff] %v940
        %946 = vst [vmem:[%s942 + $0x18] sm:$0xff] %v941
        %s947 = scalar_lea.vmem %s374, 96 [#allocation3]
        %v948 = vld [vmem:[%s947] sm:$0xff]
        %v949 = vld [vmem:[%s947 + $0x8] sm:$0xff]
        %v950 = vld [vmem:[%s947 + $0x10] sm:$0xff]
        %v951 = vld [vmem:[%s947 + $0x18] sm:$0xff]
        %952 = vmatpush.msra.mxu0 0.0
        %953 = vmatpush.msra.mxu0 0.0
        %954 = vmatpush.msra.mxu0 0.0
        %955 = vmatpush.msra.mxu0 0.0
        %956 = vmatpush.msra.mxu0 0.0
        %957 = vmatpush.msra.mxu0 0.0
        %958 = vmatpush.msra.mxu0 0.0
        %959 = vmatpush.msra.mxu0 0.0
        %960 = vmatpush.msra.mxu0 0.0
        %961 = vmatpush.msra.mxu0 0.0
        %962 = vmatpush.msra.mxu0 0.0
        %963 = vmatpush.msra.mxu0 0.0
        %964 = vmatpush.msra.mxu0 0.0
        %965 = vmatpush.msra.mxu0 0.0
        %966 = vmatpush.msra.mxu0 %v950
        %967 = vmatpush.msra.mxu0 %v948
        %968 = vmatmul.f32.gmra.mxu0 %v768
        %v969 = vpop.f32.mrf.mxu0
        %v970 = vadd.f32 0.0, %v969
        %971 = vmatmul.f32.gmra.mxu0 %v771
        %v972 = vpop.f32.mrf.mxu0
        %v973 = vadd.f32 0.0, %v972
        %974 = vdwg.mxu0
        %975 = vmatpush.msra.mxu0 0.0
        %976 = vmatpush.msra.mxu0 0.0
        %977 = vmatpush.msra.mxu0 0.0
        %978 = vmatpush.msra.mxu0 0.0
        %979 = vmatpush.msra.mxu0 0.0
        %980 = vmatpush.msra.mxu0 0.0
        %981 = vmatpush.msra.mxu0 0.0
        %982 = vmatpush.msra.mxu0 0.0
        %983 = vmatpush.msra.mxu0 0.0
        %984 = vmatpush.msra.mxu0 0.0
        %985 = vmatpush.msra.mxu0 0.0
        %986 = vmatpush.msra.mxu0 0.0
        %987 = vmatpush.msra.mxu0 0.0
        %988 = vmatpush.msra.mxu0 0.0
        %989 = vmatpush.msra.mxu0 %v951
        %990 = vmatpush.msra.mxu0 %v949
        %991 = vmatmul.f32.gmra.mxu0 %v768
        %v992 = vpop.f32.mrf.mxu0
        %v993 = vadd.f32 0.0, %v992
        %994 = vmatmul.f32.gmra.mxu0 %v771
        %v995 = vpop.f32.mrf.mxu0
        %v996 = vadd.f32 0.0, %v995
        %997 = vdwg.mxu0
        %v998 = vadd.f32 %v667, %v970
        %v999 = vadd.f32 %v732, %v993
        %v1000 = vadd.f32 %v670, %v973
        %v1001 = vadd.f32 %v735, %v996
        %s1002 = scalar_lea.vmem %s403, 96 [#allocation4]
        %1003 = vst [vmem:[%s1002] sm:$0xff] %v998
        %1004 = vst [vmem:[%s1002 + $0x8] sm:$0xff] %v999
        %1005 = vst [vmem:[%s1002 + $0x10] sm:$0xff] %v1000
        %1006 = vst [vmem:[%s1002 + $0x18] sm:$0xff] %v1001
        %s1007 = scalar_lea.vmem %s374, 128 [#allocation3]
        %v1008 = vld [vmem:[%s1007] sm:$0xff]
        %v1009 = vld [vmem:[%s1007 + $0x8] sm:$0xff]
        %v1010 = vld [vmem:[%s1007 + $0x10] sm:$0xff]
        %v1011 = vld [vmem:[%s1007 + $0x18] sm:$0xff]
        %1012 = vmatpush.msra.mxu0 0.0
        %1013 = vmatpush.msra.mxu0 0.0
        %1014 = vmatpush.msra.mxu0 0.0
        %1015 = vmatpush.msra.mxu0 0.0
        %1016 = vmatpush.msra.mxu0 0.0
        %1017 = vmatpush.msra.mxu0 0.0
        %1018 = vmatpush.msra.mxu0 0.0
        %1019 = vmatpush.msra.mxu0 0.0
        %1020 = vmatpush.msra.mxu0 0.0
        %1021 = vmatpush.msra.mxu0 0.0
        %1022 = vmatpush.msra.mxu0 0.0
        %1023 = vmatpush.msra.mxu0 0.0
        %1024 = vmatpush.msra.mxu0 0.0
        %1025 = vmatpush.msra.mxu0 0.0
        %1026 = vmatpush.msra.mxu0 %v1010
        %1027 = vmatpush.msra.mxu0 %v1008
        %1028 = vmatmul.f32.gmra.mxu0 %v768
        %v1029 = vpop.f32.mrf.mxu0
        %v1030 = vadd.f32 0.0, %v1029
        %1031 = vmatmul.f32.gmra.mxu0 %v771
        %v1032 = vpop.f32.mrf.mxu0
        %v1033 = vadd.f32 0.0, %v1032
        %1034 = vdwg.mxu0
        %1035 = vmatpush.msra.mxu0 0.0
        %1036 = vmatpush.msra.mxu0 0.0
        %1037 = vmatpush.msra.mxu0 0.0
        %1038 = vmatpush.msra.mxu0 0.0
        %1039 = vmatpush.msra.mxu0 0.0
        %1040 = vmatpush.msra.mxu0 0.0
        %1041 = vmatpush.msra.mxu0 0.0
        %1042 = vmatpush.msra.mxu0 0.0
        %1043 = vmatpush.msra.mxu0 0.0
        %1044 = vmatpush.msra.mxu0 0.0
        %1045 = vmatpush.msra.mxu0 0.0
        %1046 = vmatpush.msra.mxu0 0.0
        %1047 = vmatpush.msra.mxu0 0.0
        %1048 = vmatpush.msra.mxu0 0.0
        %1049 = vmatpush.msra.mxu0 %v1011
        %1050 = vmatpush.msra.mxu0 %v1009
        %1051 = vmatmul.f32.gmra.mxu0 %v768
        %v1052 = vpop.f32.mrf.mxu0
        %v1053 = vadd.f32 0.0, %v1052
        %1054 = vmatmul.f32.gmra.mxu0 %v771
        %v1055 = vpop.f32.mrf.mxu0
        %v1056 = vadd.f32 0.0, %v1055
        %1057 = vdwg.mxu0
        %v1058 = vadd.f32 %v673, %v1030
        %v1059 = vadd.f32 %v738, %v1053
        %v1060 = vadd.f32 %v676, %v1033
        %v1061 = vadd.f32 %v741, %v1056
        %s1062 = scalar_lea.vmem %s403, 128 [#allocation4]
        %1063 = vst [vmem:[%s1062] sm:$0xff] %v1058
        %1064 = vst [vmem:[%s1062 + $0x8] sm:$0xff] %v1059
        %1065 = vst [vmem:[%s1062 + $0x10] sm:$0xff] %v1060
        %1066 = vst [vmem:[%s1062 + $0x18] sm:$0xff] %v1061
        %s1067 = scalar_lea.vmem %s374, 160 [#allocation3]
        %v1068 = vld [vmem:[%s1067] sm:$0xff]
        %v1069 = vld [vmem:[%s1067 + $0x8] sm:$0xff]
        %v1070 = vld [vmem:[%s1067 + $0x10] sm:$0xff]
        %v1071 = vld [vmem:[%s1067 + $0x18] sm:$0xff]
        %1072 = vmatpush.msra.mxu0 0.0
        %1073 = vmatpush.msra.mxu0 0.0
        %1074 = vmatpush.msra.mxu0 0.0
        %1075 = vmatpush.msra.mxu0 0.0
        %1076 = vmatpush.msra.mxu0 0.0
        %1077 = vmatpush.msra.mxu0 0.0
        %1078 = vmatpush.msra.mxu0 0.0
        %1079 = vmatpush.msra.mxu0 0.0
        %1080 = vmatpush.msra.mxu0 0.0
        %1081 = vmatpush.msra.mxu0 0.0
        %1082 = vmatpush.msra.mxu0 0.0
        %1083 = vmatpush.msra.mxu0 0.0
        %1084 = vmatpush.msra.mxu0 0.0
        %1085 = vmatpush.msra.mxu0 0.0
        %1086 = vmatpush.msra.mxu0 %v1070
        %1087 = vmatpush.msra.mxu0 %v1068
        %1088 = vmatmul.f32.gmra.mxu0 %v768
        %v1089 = vpop.f32.mrf.mxu0
        %v1090 = vadd.f32 0.0, %v1089
        %1091 = vmatmul.f32.gmra.mxu0 %v771
        %v1092 = vpop.f32.mrf.mxu0
        %v1093 = vadd.f32 0.0, %v1092
        %1094 = vdwg.mxu0
        %1095 = vmatpush.msra.mxu0 0.0
        %1096 = vmatpush.msra.mxu0 0.0
        %1097 = vmatpush.msra.mxu0 0.0
        %1098 = vmatpush.msra.mxu0 0.0
        %1099 = vmatpush.msra.mxu0 0.0
        %1100 = vmatpush.msra.mxu0 0.0
        %1101 = vmatpush.msra.mxu0 0.0
        %1102 = vmatpush.msra.mxu0 0.0
        %1103 = vmatpush.msra.mxu0 0.0
        %1104 = vmatpush.msra.mxu0 0.0
        %1105 = vmatpush.msra.mxu0 0.0
        %1106 = vmatpush.msra.mxu0 0.0
        %1107 = vmatpush.msra.mxu0 0.0
        %1108 = vmatpush.msra.mxu0 0.0
        %1109 = vmatpush.msra.mxu0 %v1071
        %1110 = vmatpush.msra.mxu0 %v1069
        %1111 = vmatmul.f32.gmra.mxu0 %v768
        %v1112 = vpop.f32.mrf.mxu0
        %v1113 = vadd.f32 0.0, %v1112
        %1114 = vmatmul.f32.gmra.mxu0 %v771
        %v1115 = vpop.f32.mrf.mxu0
        %v1116 = vadd.f32 0.0, %v1115
        %1117 = vdwg.mxu0
        %v1118 = vadd.f32 %v679, %v1090
        %v1119 = vadd.f32 %v744, %v1113
        %v1120 = vadd.f32 %v682, %v1093
        %v1121 = vadd.f32 %v747, %v1116
        %s1122 = scalar_lea.vmem %s403, 160 [#allocation4]
        %1123 = vst [vmem:[%s1122] sm:$0xff] %v1118
        %1124 = vst [vmem:[%s1122 + $0x8] sm:$0xff] %v1119
        %1125 = vst [vmem:[%s1122 + $0x10] sm:$0xff] %v1120
        %1126 = vst [vmem:[%s1122 + $0x18] sm:$0xff] %v1121
        %s1127 = scalar_lea.vmem %s374, 192 [#allocation3]
        %v1128 = vld [vmem:[%s1127] sm:$0xff]
        %v1129 = vld [vmem:[%s1127 + $0x8] sm:$0xff]
        %v1130 = vld [vmem:[%s1127 + $0x10] sm:$0xff]
        %v1131 = vld [vmem:[%s1127 + $0x18] sm:$0xff]
        %1132 = vmatpush.msra.mxu0 0.0
        %1133 = vmatpush.msra.mxu0 0.0
        %1134 = vmatpush.msra.mxu0 0.0
        %1135 = vmatpush.msra.mxu0 0.0
        %1136 = vmatpush.msra.mxu0 0.0
        %1137 = vmatpush.msra.mxu0 0.0
        %1138 = vmatpush.msra.mxu0 0.0
        %1139 = vmatpush.msra.mxu0 0.0
        %1140 = vmatpush.msra.mxu0 0.0
        %1141 = vmatpush.msra.mxu0 0.0
        %1142 = vmatpush.msra.mxu0 0.0
        %1143 = vmatpush.msra.mxu0 0.0
        %1144 = vmatpush.msra.mxu0 0.0
        %1145 = vmatpush.msra.mxu0 0.0
        %1146 = vmatpush.msra.mxu0 %v1130
        %1147 = vmatpush.msra.mxu0 %v1128
        %1148 = vmatmul.f32.gmra.mxu0 %v768
        %v1149 = vpop.f32.mrf.mxu0
        %v1150 = vadd.f32 0.0, %v1149
        %1151 = vmatmul.f32.gmra.mxu0 %v771
        %v1152 = vpop.f32.mrf.mxu0
        %v1153 = vadd.f32 0.0, %v1152
        %1154 = vdwg.mxu0
        %1155 = vmatpush.msra.mxu0 0.0
        %1156 = vmatpush.msra.mxu0 0.0
        %1157 = vmatpush.msra.mxu0 0.0
        %1158 = vmatpush.msra.mxu0 0.0
        %1159 = vmatpush.msra.mxu0 0.0
        %1160 = vmatpush.msra.mxu0 0.0
        %1161 = vmatpush.msra.mxu0 0.0
        %1162 = vmatpush.msra.mxu0 0.0
        %1163 = vmatpush.msra.mxu0 0.0
        %1164 = vmatpush.msra.mxu0 0.0
        %1165 = vmatpush.msra.mxu0 0.0
        %1166 = vmatpush.msra.mxu0 0.0
        %1167 = vmatpush.msra.mxu0 0.0
        %1168 = vmatpush.msra.mxu0 0.0
        %1169 = vmatpush.msra.mxu0 %v1131
        %1170 = vmatpush.msra.mxu0 %v1129
        %1171 = vmatmul.f32.gmra.mxu0 %v768
        %v1172 = vpop.f32.mrf.mxu0
        %v1173 = vadd.f32 0.0, %v1172
        %1174 = vmatmul.f32.gmra.mxu0 %v771
        %v1175 = vpop.f32.mrf.mxu0
        %v1176 = vadd.f32 0.0, %v1175
        %1177 = vdwg.mxu0
        %v1178 = vadd.f32 %v685, %v1150
        %v1179 = vadd.f32 %v750, %v1173
        %v1180 = vadd.f32 %v688, %v1153
        %v1181 = vadd.f32 %v753, %v1176
        %s1182 = scalar_lea.vmem %s403, 192 [#allocation4]
        %1183 = vst [vmem:[%s1182] sm:$0xff] %v1178
        %1184 = vst [vmem:[%s1182 + $0x8] sm:$0xff] %v1179
        %1185 = vst [vmem:[%s1182 + $0x10] sm:$0xff] %v1180
        %1186 = vst [vmem:[%s1182 + $0x18] sm:$0xff] %v1181
        %s1187 = scalar_lea.vmem %s374, 224 [#allocation3]
        %v1188 = vld [vmem:[%s1187] sm:$0xff]
        %v1189 = vld [vmem:[%s1187 + $0x8] sm:$0xff]
        %v1190 = vld [vmem:[%s1187 + $0x10] sm:$0xff]
        %v1191 = vld [vmem:[%s1187 + $0x18] sm:$0xff]
        %1192 = vmatpush.msra.mxu0 0.0
        %1193 = vmatpush.msra.mxu0 0.0
        %1194 = vmatpush.msra.mxu0 0.0
        %1195 = vmatpush.msra.mxu0 0.0
        %1196 = vmatpush.msra.mxu0 0.0
        %1197 = vmatpush.msra.mxu0 0.0
        %1198 = vmatpush.msra.mxu0 0.0
        %1199 = vmatpush.msra.mxu0 0.0
        %1200 = vmatpush.msra.mxu0 0.0
        %1201 = vmatpush.msra.mxu0 0.0
        %1202 = vmatpush.msra.mxu0 0.0
        %1203 = vmatpush.msra.mxu0 0.0
        %1204 = vmatpush.msra.mxu0 0.0
        %1205 = vmatpush.msra.mxu0 0.0
        %1206 = vmatpush.msra.mxu0 %v1190
        %1207 = vmatpush.msra.mxu0 %v1188
        %1208 = vmatmul.f32.gmra.mxu0 %v768
        %v1209 = vpop.f32.mrf.mxu0
        %v1210 = vadd.f32 0.0, %v1209
        %1211 = vmatmul.f32.gmra.mxu0 %v771
        %v1212 = vpop.f32.mrf.mxu0
        %v1213 = vadd.f32 0.0, %v1212
        %1214 = vdwg.mxu0
        %1215 = vmatpush.msra.mxu0 0.0
        %1216 = vmatpush.msra.mxu0 0.0
        %1217 = vmatpush.msra.mxu0 0.0
        %1218 = vmatpush.msra.mxu0 0.0
        %1219 = vmatpush.msra.mxu0 0.0
        %1220 = vmatpush.msra.mxu0 0.0
        %1221 = vmatpush.msra.mxu0 0.0
        %1222 = vmatpush.msra.mxu0 0.0
        %1223 = vmatpush.msra.mxu0 0.0
        %1224 = vmatpush.msra.mxu0 0.0
        %1225 = vmatpush.msra.mxu0 0.0
        %1226 = vmatpush.msra.mxu0 0.0
        %1227 = vmatpush.msra.mxu0 0.0
        %1228 = vmatpush.msra.mxu0 0.0
        %1229 = vmatpush.msra.mxu0 %v1191
        %1230 = vmatpush.msra.mxu0 %v1189
        %1231 = vmatmul.f32.gmra.mxu0 %v768
        %v1232 = vpop.f32.mrf.mxu0
        %v1233 = vadd.f32 0.0, %v1232
        %1234 = vmatmul.f32.gmra.mxu0 %v771
        %v1235 = vpop.f32.mrf.mxu0
        %v1236 = vadd.f32 0.0, %v1235
        %1237 = vdwg.mxu0
        %v1238 = vadd.f32 %v691, %v1210
        %v1239 = vadd.f32 %v756, %v1233
        %v1240 = vadd.f32 %v694, %v1213
        %v1241 = vadd.f32 %v759, %v1236
        %s1242 = scalar_lea.vmem %s403, 224 [#allocation4]
        %1243 = vst [vmem:[%s1242] sm:$0xff] %v1238
        %1244 = vst [vmem:[%s1242 + $0x8] sm:$0xff] %v1239
        %1245 = vst [vmem:[%s1242 + $0x10] sm:$0xff] %v1240
        %1246 = vst [vmem:[%s1242 + $0x18] sm:$0xff] %v1241
        %s1247 = sand.u32 %s179, 1
        %s1248 = sand.u32 %s179, 1
        %s1249 = smul.addr %s1248, 256
        %s1250 = scalar_lea.vmem [#allocation4], %s1249
        // Predicated region
        $region91: #{consecutive_conv_up.1} parent=81 // pred_check
          %p1251 = pneg %p189
        $region92: #{consecutive_conv_up.1} parent=81 // pred_check_branch
          %1253 = sbr.rel (%p1251) target = $region94
        $region93: #{consecutive_conv_up.1} parent=81 // pred_region
          %s1254 = smul.u32 2, %s22
          %s1255 = smul.addr %s21, 64
          %s1256 = sadd.s32 %s1254, %s1255
          %s1257 = smul.addr %s1256, 8
          %s1258 = scalar_lea.vmem %s6, %s1257
          // Predicated region
          $region95: #{consecutive_conv_up.1} parent=93 // pred_check
            _
          $region96: #{consecutive_conv_up.1} parent=93 // pred_check_branch
            %1260 = sbr.rel (0) target = $region98
          $region97: #{consecutive_conv_up.1} parent=93 // pred_region
            // Predicated region
            $region99: #{consecutive_conv_up.1} parent=97 // pred_check
              _
            $region100: #{consecutive_conv_up.1} parent=97 // pred_check_branch
              %1262 = sbr.rel (0) target = $region102
            $region101: #{consecutive_conv_up.1} parent=97 // pred_region
              loop: start=0, step=1, limit=1
              $region103: #{consecutive_conv_up.1} parent=101 // loop_pre_header
                _
              $region104: #{consecutive_conv_up.1} parent=101 // loop_header
                %s1264 = sphi 0, %s1268
                %p1265 = scmp.ge.s32.totalorder %s1264, 1
                %s1269 = sphi %s1250, %s1250
                %s1270 = sphi %s1258, %s1258
              $region105: #{consecutive_conv_up.1} parent=101 // loop_header_branch
                %1267 = sbr.rel (%p1265) target = $region109
              $region106: #{consecutive_conv_up.1} parent=101 // loop_body
                %v1271 = vld [vmem:[%s1269] sm:$0xff]
                %1272 = vst [vmem:[%s1270] sm:$0xff] %v1271
                %v1273 = vld [vmem:[%s1269 + $0x8] sm:$0xff]
                %1274 = vst [vmem:[%s1270 + $0x8] sm:$0xff] %v1273
                %v1275 = vld [vmem:[%s1269 + $0x10] sm:$0xff]
                %1276 = vst [vmem:[%s1270 + $0x20] sm:$0xff] %v1275
                %v1277 = vld [vmem:[%s1269 + $0x18] sm:$0xff]
                %1278 = vst [vmem:[%s1270 + $0x28] sm:$0xff] %v1277
                %v1279 = vld [vmem:[%s1269 + $0x20] sm:$0xff]
                %1280 = vst [vmem:[%s1270 + $0x40] sm:$0xff] %v1279
                %v1281 = vld [vmem:[%s1269 + $0x28] sm:$0xff]
                %1282 = vst [vmem:[%s1270 + $0x48] sm:$0xff] %v1281
                %v1283 = vld [vmem:[%s1269 + $0x30] sm:$0xff]
                %1284 = vst [vmem:[%s1270 + $0x60] sm:$0xff] %v1283
                %v1285 = vld [vmem:[%s1269 + $0x38] sm:$0xff]
                %1286 = vst [vmem:[%s1270 + $0x68] sm:$0xff] %v1285
                %v1287 = vld [vmem:[%s1269 + $0x40] sm:$0xff]
                %1288 = vst [vmem:[%s1270 + $0x80] sm:$0xff] %v1287
                %v1289 = vld [vmem:[%s1269 + $0x48] sm:$0xff]
                %1290 = vst [vmem:[%s1270 + $0x88] sm:$0xff] %v1289
                %v1291 = vld [vmem:[%s1269 + $0x50] sm:$0xff]
                %1292 = vst [vmem:[%s1270 + $0xa0] sm:$0xff] %v1291
                %v1293 = vld [vmem:[%s1269 + $0x58] sm:$0xff]
                %1294 = vst [vmem:[%s1270 + $0xa8] sm:$0xff] %v1293
                %v1295 = vld [vmem:[%s1269 + $0x60] sm:$0xff]
                %1296 = vst [vmem:[%s1270 + $0xc0] sm:$0xff] %v1295
                %v1297 = vld [vmem:[%s1269 + $0x68] sm:$0xff]
                %1298 = vst [vmem:[%s1270 + $0xc8] sm:$0xff] %v1297
                %v1299 = vld [vmem:[%s1269 + $0x70] sm:$0xff]
                %1300 = vst [vmem:[%s1270 + $0xe0] sm:$0xff] %v1299
                %v1301 = vld [vmem:[%s1269 + $0x78] sm:$0xff]
                %1302 = vst [vmem:[%s1270 + $0xe8] sm:$0xff] %v1301
                %v1303 = vld [vmem:[%s1269 + $0x80] sm:$0xff]
                %1304 = vst [vmem:[%s1270 + $0x100] sm:$0xff] %v1303
                %v1305 = vld [vmem:[%s1269 + $0x88] sm:$0xff]
                %1306 = vst [vmem:[%s1270 + $0x108] sm:$0xff] %v1305
                %v1307 = vld [vmem:[%s1269 + $0x90] sm:$0xff]
                %1308 = vst [vmem:[%s1270 + $0x120] sm:$0xff] %v1307
                %v1309 = vld [vmem:[%s1269 + $0x98] sm:$0xff]
                %1310 = vst [vmem:[%s1270 + $0x128] sm:$0xff] %v1309
                %v1311 = vld [vmem:[%s1269 + $0xa0] sm:$0xff]
                %1312 = vst [vmem:[%s1270 + $0x140] sm:$0xff] %v1311
                %v1313 = vld [vmem:[%s1269 + $0xa8] sm:$0xff]
                %1314 = vst [vmem:[%s1270 + $0x148] sm:$0xff] %v1313
                %v1315 = vld [vmem:[%s1269 + $0xb0] sm:$0xff]
                %1316 = vst [vmem:[%s1270 + $0x160] sm:$0xff] %v1315
                %v1317 = vld [vmem:[%s1269 + $0xb8] sm:$0xff]
                %1318 = vst [vmem:[%s1270 + $0x168] sm:$0xff] %v1317
                %v1319 = vld [vmem:[%s1269 + $0xc0] sm:$0xff]
                %1320 = vst [vmem:[%s1270 + $0x180] sm:$0xff] %v1319
                %v1321 = vld [vmem:[%s1269 + $0xc8] sm:$0xff]
                %1322 = vst [vmem:[%s1270 + $0x188] sm:$0xff] %v1321
                %v1323 = vld [vmem:[%s1269 + $0xd0] sm:$0xff]
                %1324 = vst [vmem:[%s1270 + $0x1a0] sm:$0xff] %v1323
                %v1325 = vld [vmem:[%s1269 + $0xd8] sm:$0xff]
                %1326 = vst [vmem:[%s1270 + $0x1a8] sm:$0xff] %v1325
                %v1327 = vld [vmem:[%s1269 + $0xe0] sm:$0xff]
                %1328 = vst [vmem:[%s1270 + $0x1c0] sm:$0xff] %v1327
                %v1329 = vld [vmem:[%s1269 + $0xe8] sm:$0xff]
                %1330 = vst [vmem:[%s1270 + $0x1c8] sm:$0xff] %v1329
                %v1331 = vld [vmem:[%s1269 + $0xf0] sm:$0xff]
                %1332 = vst [vmem:[%s1270 + $0x1e0] sm:$0xff] %v1331
                %v1333 = vld [vmem:[%s1269 + $0xf8] sm:$0xff]
                %1334 = vst [vmem:[%s1270 + $0x1e8] sm:$0xff] %v1333
              $region107: #{consecutive_conv_up.1} parent=101 // loop_footer
                %s1268 = sadd.s32 1, %s1264
              $region108: #{consecutive_conv_up.1} parent=101 // loop_footer_branch
                %1263 = sbr.rel target = $region104
              $region109: #{consecutive_conv_up.1} parent=101 // loop_exit
                _
            $region102: #{consecutive_conv_up.1} parent=97 // pred_fallthru
              _
            // Predicated region
            $region110: #{consecutive_conv_up.1} parent=97 // pred_check
              _
            $region111: #{consecutive_conv_up.1} parent=97 // pred_check_branch
              %1336 = sbr.rel target = $region113
            $region112: #{consecutive_conv_up.1} parent=97 // pred_region
              _
            $region113: #{consecutive_conv_up.1} parent=97 // pred_fallthru
              _
          $region98: #{consecutive_conv_up.1} parent=93 // pred_fallthru
            _
          %1337 = vnop
        $region94: #{consecutive_conv_up.1} parent=81 // pred_fallthru
          _
      $region82: #{consecutive_conv_up.1} parent=5 // pred_fallthru
        _
      %p1338 = scmp.le.s32.totalorder 2, %s12
      // Predicated region
      $region114: #{consecutive_conv_up.1} parent=5 // pred_check
        %p1339 = pneg %p1338
      $region115: #{consecutive_conv_up.1} parent=5 // pred_check_branch
        %1341 = sbr.rel (%p1339) target = $region117
      $region116: #{consecutive_conv_up.1} parent=5 // pred_region
        %s1342 = ssub.s32 %s12, 2
        // Predicated region
        $region118: #{consecutive_conv_up.1} parent=116 // pred_check
          %p1343 = pneg %p195
        $region119: #{consecutive_conv_up.1} parent=116 // pred_check_branch
          %1345 = sbr.rel (%p1343) target = $region121
        $region120: #{consecutive_conv_up.1} parent=116 // pred_region
          %s1346 = sand.u32 %s180, 1
          %s1347 = sand.u32 %s180, 1
          %s1348 = smul.addr %s1347, 256
          %s1349 = scalar_lea.vmem [#allocation4], %s1348
        $region121: #{consecutive_conv_up.1} parent=116 // pred_fallthru
          _
      $region117: #{consecutive_conv_up.1} parent=5 // pred_fallthru
        _
    $region6: #{consecutive_conv_up.1} parent=1 // loop_footer
      %s16 = sadd.s32 1, %s12
    $region7: #{consecutive_conv_up.1} parent=1 // loop_footer_branch
      %11 = sbr.rel target = $region3
    $region8: #{consecutive_conv_up.1} parent=1 // loop_exit
      _

</llo_original>
